<compile_context>
chip_gen: v6e
topology: v6e:2x2x1
jax: 0.10.0
libtpu: 0.0.40
codegen_flags: <defaults>
</compile_context>

<pallas_src>
import math
import functools

import jax
import jax.numpy as jnp
from jax import lax
from jax.experimental import pallas as pl
from jax.experimental.pallas import tpu as pltpu


NEG_BIG = -1e30   # finite stand-in for -inf: no inf-inf NaN risk in exp()


def _flash_attn_kernel(q_ref, k_ref, v_ref, wo_ref, bo_ref, o_ref,
                       m_ref, l_ref, acc_ref,
                       *, num_heads: int, head_dim: int, compute_dtype):
    """One (batch, query-tile, kv-tile) grid step of causal flash attention.

    q_ref : (1, H, tq, hd)  compute_dtype, already scaled by 1/sqrt(hd)
    k_ref : (1, H, tk, hd)  compute_dtype
    v_ref : (1, H, tk, hd)  compute_dtype
    wo_ref: (C, C)          compute_dtype  (out_proj weight, pre-transposed)
    bo_ref: (1, C)          float32
    o_ref : (1, tq, C)      output dtype
    m/l/acc: online-softmax scratch, persistent across the KV grid axis.
    """
    tq = q_ref.shape[2]
    tk = k_ref.shape[2]

    qi = pl.program_id(1)
    ki = pl.program_id(2)
    n_kv = pl.num_programs(2)

    q_start = qi * tq
    q_end = q_start + tq - 1
    kv_start = ki * tk
    kv_end = kv_start + tk - 1

    # ---- init online-softmax state at the first KV step --------------------
    @pl.when(ki == 0)
    def _():
        m_ref[...] = jnp.full((num_heads, tq, 1), NEG_BIG, jnp.float32)
        l_ref[...] = jnp.zeros((num_heads, tq, 1), jnp.float32)
        acc_ref[...] = jnp.zeros((num_heads, tq, head_dim), jnp.float32)

    def scores():
        # (H, tq, tk) f32 logits; heads batched, contraction over hd,
        # no explicit K transpose.
        return jnp.einsum('hqd,hkd->hqk', q_ref[0], k_ref[0],
                          preferred_element_type=jnp.float32)

    def online_update(s):
        m_prev = m_ref[...]                                        # (H, tq, 1)
        m_new = jnp.maximum(m_prev, jnp.max(s, axis=-1, keepdims=True))
        alpha = jnp.exp(m_prev - m_new)
        p = jnp.exp(s - m_new)                                     # (H, tq, tk)
        l_ref[...] = alpha * l_ref[...] + jnp.sum(p, axis=-1, keepdims=True)
        acc_ref[...] = alpha * acc_ref[...] + jnp.einsum(
            'hqk,hkd->hqd', p.astype(compute_dtype), v_ref[0],
            preferred_element_type=jnp.float32)
        m_ref[...] = m_new

    # Fully-visible KV tile (strictly below the diagonal): no mask at all.
    @pl.when(kv_end <= q_start)
    def _():
        online_update(scores())

    # Diagonal KV tile: build & apply the causal mask (only here).
    @pl.when(jnp.logical_and(kv_start <= q_end, kv_end > q_start))
    def _():
        s = scores()
        row = q_start + lax.broadcasted_iota(jnp.int32, (1, tq, tk), 1)
        col = kv_start + lax.broadcasted_iota(jnp.int32, (1, tq, tk), 2)
        s = jnp.where(col <= row, s, NEG_BIG)
        online_update(s)

    # KV tiles fully above the diagonal (kv_start > q_end): compute skipped.

    # ---- finalize: normalize, concat heads, single full-C out projection ---
    @pl.when(ki == n_kv - 1)
    def _():
        inv_l = pl.reciprocal(l_ref[...], approx=True)             # (H, tq, 1)
        normed = acc_ref[...] * inv_l                              # (H, tq, hd)
        # Head h lands at columns [h*hd, (h+1)*hd): matches
        # torch's out.transpose(1, 2).reshape(B, T, C).
        out_tc = jnp.concatenate(
            [normed[h] for h in range(num_heads)], axis=-1)        # (tq, C)
        out = jnp.dot(out_tc.astype(compute_dtype), wo_ref[...],
                      preferred_element_type=jnp.float32) + bo_ref[...]
        o_ref[0] = out.astype(o_ref.dtype)


def _pick_tile(n: int, candidates) -> int:
    for t in candidates:
        if n >= t and n % t == 0:
            return t
    return n


def self_attention(x, wqkv, bqkv, wout, bout, *, num_heads: int,
                   compute_dtype=jnp.bfloat16, tq=None, tk=None):
    """Pallas TPU forward matching the PyTorch SelfAttention module.

    Weights follow the nn.Linear convention (y = x @ W.T + b): wqkv is (3C, C),
    wout is (C, C).  QKV projection runs in the wrapper (XLA); the kernel does
    flash-style causal attention + the output projection.
    """
    B, T, C = x.shape
    assert C % num_heads == 0
    head_dim = C // num_heads
    out_dtype = x.dtype

    if tq is None:
        tq = _pick_tile(T, (256, 128))
    if tk is None:
        tk = _pick_tile(T, (512, 256, 128))
    assert T % tq == 0 and T % tk == 0
    n_q, n_kv = T // tq, T // tk

    # ---- Q/K/V projections hoisted out of the kernel (computed once). ------
    scale = 1.0 / math.sqrt(head_dim)
    qkv = jnp.einsum('btc,oc->bto', x.astype(compute_dtype),
                     wqkv.astype(compute_dtype),
                     preferred_element_type=jnp.float32)
    qkv = qkv + bqkv.astype(jnp.float32)                    # (B, T, 3C) f32
    qkv = qkv.reshape(B, T, 3, num_heads, head_dim)
    qkv = jnp.transpose(qkv, (2, 0, 3, 1, 4))               # (3, B, H, T, hd)
    q = (qkv[0] * scale).astype(compute_dtype)              # scale folded in
    k = qkv[1].astype(compute_dtype)
    v = qkv[2].astype(compute_dtype)

    wo_t = wout.T.astype(compute_dtype)                     # (C, C) (in, out)
    bo = bout.reshape(1, C).astype(jnp.float32)

    kernel = functools.partial(_flash_attn_kernel, num_heads=num_heads,
                               head_dim=head_dim, compute_dtype=compute_dtype)

    rep = lambda b, qi, ki: (0, 0)                          # constant operands

    return pl.pallas_call(
        kernel,
        out_shape=jax.ShapeDtypeStruct((B, T, C), out_dtype),
        grid_spec=pltpu.PrefetchScalarGridSpec(
            num_scalar_prefetch=0,
            grid=(B, n_q, n_kv),                            # KV (reduction) last
            in_specs=[
                pl.BlockSpec((1, num_heads, tq, head_dim),
                             lambda b, qi, ki: (b, 0, qi, 0)),   # Q tile
                pl.BlockSpec((1, num_heads, tk, head_dim),
                             lambda b, qi, ki: (b, 0, ki, 0)),   # K tile
                pl.BlockSpec((1, num_heads, tk, head_dim),
                             lambda b, qi, ki: (b, 0, ki, 0)),   # V tile
                pl.BlockSpec((C, C), rep),                       # Wout^T
                pl.BlockSpec((1, C), rep),                       # bout
            ],
            out_specs=pl.BlockSpec((1, tq, C), lambda b, qi, ki: (b, qi, 0)),
            scratch_shapes=[
                pltpu.VMEM((num_heads, tq, 1), jnp.float32),          # m
                pltpu.VMEM((num_heads, tq, 1), jnp.float32),          # l
                pltpu.VMEM((num_heads, tq, head_dim), jnp.float32),   # acc
            ]),
        compiler_params=pltpu.CompilerParams(
            dimension_semantics=("parallel", "parallel", "arbitrary"),
            vmem_limit_bytes=48 * 1024 * 1024),
    )(q, k, v, wo_t, bo)


def self_attention_ref(x, wqkv, bqkv, wout, bout, *, num_heads: int):
    """Pure-JAX f32 reference matching the PyTorch forward."""
    B, T, C = x.shape
    hd = C // num_heads
    qkv = jnp.einsum("btc,oc->bto", x, wqkv) + bqkv          # (B, T, 3C)
    qkv = qkv.reshape(B, T, 3, num_heads, hd)
    qkv = jnp.transpose(qkv, (2, 0, 3, 1, 4))                # (3, B, H, T, hd)
    q, k, v = qkv[0], qkv[1], qkv[2]
    att = jnp.einsum("bhtd,bhsd->bhts", q, k) / math.sqrt(hd)
    mask = jnp.tril(jnp.ones((T, T), dtype=bool))
    att = jnp.where(mask, att, -jnp.inf)
    att = jax.nn.softmax(att, axis=-1)
    out = jnp.einsum("bhts,bhsd->bhtd", att, v)              # (B, H, T, hd)
    out = jnp.transpose(out, (0, 2, 1, 3)).reshape(B, T, C)
    return jnp.einsum("btc,oc->bto", out, wout) + bout


def _make_params(key, C, num_heads):
    k1, k2, k3, k4, k5 = jax.random.split(key, 5)
    bound = 1.0 / math.sqrt(C)
    wqkv = jax.random.uniform(k2, (3 * C, C), minval=-bound, maxval=bound,
                              dtype=jnp.float32)
    bqkv = jax.random.uniform(k3, (3 * C,), minval=-bound, maxval=bound,
                              dtype=jnp.float32)
    wout = jax.random.uniform(k4, (C, C), minval=-bound, maxval=bound,
                              dtype=jnp.float32)
    bout = jax.random.uniform(k5, (C,), minval=-bound, maxval=bound,
                              dtype=jnp.float32)
    return k1, wqkv, bqkv, wout, bout


if __name__ == "__main__":
    # --- Test 1: small shapes consistent with the module spec ---------------
    B, T, C = 2, 8, 32
    num_heads = 4
    kx, wqkv, bqkv, wout, bout = _make_params(jax.random.PRNGKey(0), C, num_heads)
    x = jax.random.normal(kx, (B, T, C), dtype=jnp.float32)

    out = self_attention(x, wqkv, bqkv, wout, bout, num_heads=num_heads)
    out = jax.block_until_ready(out)
    ref = self_attention_ref(x, wqkv, bqkv, wout, bout, num_heads=num_heads)
    assert out.shape == (B, T, C)
    assert jnp.allclose(out, ref, atol=5e-2, rtol=5e-2), "small-shape mismatch"

    # --- Test 2: exercises the tiled flash path (multi q/kv tiles, mask skip)
    B2, T2, C2, H2 = 1, 256, 256, 4
    kx2, wqkv2, bqkv2, wout2, bout2 = _make_params(jax.random.PRNGKey(0), C2, H2)
    x2 = jax.random.normal(kx2, (B2, T2, C2), dtype=jnp.float32)

    out2 = self_attention(x2, wqkv2, bqkv2, wout2, bout2, num_heads=H2,
                          tq=128, tk=128)
    out2 = jax.block_until_ready(out2)
    ref2 = self_attention_ref(x2, wqkv2, bqkv2, wout2, bout2, num_heads=H2)
    assert out2.shape == (B2, T2, C2)
    assert jnp.allclose(out2, ref2, atol=5e-2, rtol=5e-2), "tiled-path mismatch"

    print("KERNEL_OK")
</pallas_src>

<mosaic_0001>
module attributes {stable_mosaic.version = 11 : i64} {
  func.func @_flash_attn_kernel(%arg0: i32, %arg1: i32, %arg2: i32, %arg3: memref<1x4x8x8xbf16, #tpu.memory_space<vmem>>, %arg4: memref<1x4x8x8xbf16, #tpu.memory_space<vmem>>, %arg5: memref<1x4x8x8xbf16, #tpu.memory_space<vmem>>, %arg6: memref<32x32xbf16, #tpu.memory_space<vmem>>, %arg7: memref<1x32xf32, #tpu.memory_space<vmem>>, %arg8: memref<1x8x32xf32, #tpu.memory_space<vmem>>, %arg9: memref<4x8x1xf32, #tpu.memory_space<vmem>>, %arg10: memref<4x8x1xf32, #tpu.memory_space<vmem>>, %arg11: memref<4x8x8xf32, #tpu.memory_space<vmem>>) attributes {dimension_semantics = [#tpu.dimension_semantics<parallel>, #tpu.dimension_semantics<parallel>, #tpu.dimension_semantics<arbitrary>], iteration_bounds = array<i64: 2, 1, 1>, scalar_prefetch = 0 : i64, scratch_operands = 3 : i64, tpu.core_type = #tpu.core_type<tc>, window_params = [{transform_indices = @transform_0, window_bounds = array<i64: 1, 4, 8, 8>}, {transform_indices = @transform_1, window_bounds = array<i64: 1, 4, 8, 8>}, {transform_indices = @transform_2, window_bounds = array<i64: 1, 4, 8, 8>}, {pipeline_mode = #tpu.pipeline_mode<synchronous>, transform_indices = @transform_3, window_bounds = array<i64: 32, 32>}, {pipeline_mode = #tpu.pipeline_mode<synchronous>, transform_indices = @transform_4, window_bounds = array<i64: 1, 32>}, {transform_indices = @transform_5, window_bounds = array<i64: 1, 8, 32>}]} {
    %c8_i32 = arith.constant 8 : i32
    %0 = arith.muli %arg1, %c8_i32 : i32
    %c8_i32_0 = arith.constant 8 : i32
    %1 = arith.addi %0, %c8_i32_0 : i32
    %c1_i32 = arith.constant 1 : i32
    %2 = arith.subi %1, %c1_i32 : i32
    %c8_i32_1 = arith.constant 8 : i32
    %3 = arith.muli %arg2, %c8_i32_1 : i32
    %c8_i32_2 = arith.constant 8 : i32
    %4 = arith.addi %3, %c8_i32_2 : i32
    %c1_i32_3 = arith.constant 1 : i32
    %5 = arith.subi %4, %c1_i32_3 : i32
    %c0_i32 = arith.constant 0 : i32
    %6 = arith.cmpi eq, %arg2, %c0_i32 : i32
    %7 = arith.extui %6 : i1 to i32
    %c0_i32_4 = arith.constant 0 : i32
    %8 = arith.cmpi ne, %7, %c0_i32_4 : i32
    scf.if %8 {
      %cst = arith.constant -1.000000e+30 : f32
      %20 = vector.broadcast %cst : f32 to vector<4x8x1xf32>
      %c0 = arith.constant 0 : index
      %c0_9 = arith.constant 0 : index
      %c0_10 = arith.constant 0 : index
      %21 = vector.load %arg9[%c0, %c0_9, %c0_10] : memref<4x8x1xf32, #tpu.memory_space<vmem>>, vector<4x8x1xf32>
      tpu.vector_store %arg9[%c0, %c0_9, %c0_10], %20 {strides = array<i32>} : memref<4x8x1xf32, #tpu.memory_space<vmem>>, vector<4x8x1xf32>,
      %cst_11 = arith.constant 0.000000e+00 : f32
      %22 = vector.broadcast %cst_11 : f32 to vector<4x8x1xf32>
      %c0_12 = arith.constant 0 : index
      %c0_13 = arith.constant 0 : index
      %c0_14 = arith.constant 0 : index
      %23 = vector.load %arg10[%c0_12, %c0_13, %c0_14] : memref<4x8x1xf32, #tpu.memory_space<vmem>>, vector<4x8x1xf32>
      tpu.vector_store %arg10[%c0_12, %c0_13, %c0_14], %22 {strides = array<i32>} : memref<4x8x1xf32, #tpu.memory_space<vmem>>, vector<4x8x1xf32>,
      %cst_15 = arith.constant 0.000000e+00 : f32
      %24 = vector.broadcast %cst_15 : f32 to vector<4x8x8xf32>
      %c0_16 = arith.constant 0 : index
      %c0_17 = arith.constant 0 : index
      %c0_18 = arith.constant 0 : index
      %25 = vector.load %arg11[%c0_16, %c0_17, %c0_18] : memref<4x8x8xf32, #tpu.memory_space<vmem>>, vector<4x8x8xf32>
      tpu.vector_store %arg11[%c0_16, %c0_17, %c0_18], %24 {strides = array<i32>} : memref<4x8x8xf32, #tpu.memory_space<vmem>>, vector<4x8x8xf32>,
    } else {
    }
    %9 = arith.cmpi sle, %5, %0 : i32
    %10 = arith.extui %9 : i1 to i32
    %c0_i32_5 = arith.constant 0 : i32
    %11 = arith.cmpi ne, %10, %c0_i32_5 : i32
    scf.if %11 {
      %c0 = arith.constant 0 : index
      %c0_9 = arith.constant 0 : index
      %c0_10 = arith.constant 0 : index
      %c0_11 = arith.constant 0 : index
      %20 = vector.load %arg3[%c0, %c0_9, %c0_10, %c0_11] : memref<1x4x8x8xbf16, #tpu.memory_space<vmem>>, vector<1x4x8x8xbf16>
      %21 = vector.shape_cast %20 : vector<1x4x8x8xbf16> to vector<4x8x8xbf16>
      %c0_12 = arith.constant 0 : index
      %c0_13 = arith.constant 0 : index
      %c0_14 = arith.constant 0 : index
      %c0_15 = arith.constant 0 : index
      %22 = vector.load %arg4[%c0_12, %c0_13, %c0_14, %c0_15] : memref<1x4x8x8xbf16, #tpu.memory_space<vmem>>, vector<1x4x8x8xbf16>
      %23 = vector.shape_cast %22 : vector<1x4x8x8xbf16> to vector<4x8x8xbf16>
      "tpu.trace_start"() <{level = 10 : i32, message = "hqd,hkd->hqk"}> : () -> ()
      %cst = arith.constant dense<0.000000e+00> : vector<4x8x8xf32>
      %24 = tpu.matmul %21, %23, %cst {dimension_numbers = #tpu.dot_dimension_numbers<[2], [2], [1], [1], [0, 0, 0, 1, 1, 1], [0], [0]>} : vector<4x8x8xbf16>, vector<4x8x8xbf16>, vector<4x8x8xf32> -> vector<4x8x8xf32>
      "tpu.trace_stop"() : () -> ()
      %c0_16 = arith.constant 0 : index
      %c0_17 = arith.constant 0 : index
      %c0_18 = arith.constant 0 : index
      %25 = vector.load %arg9[%c0_16, %c0_17, %c0_18] : memref<4x8x1xf32, #tpu.memory_space<vmem>>, vector<4x8x1xf32>
      %cst_19 = arith.constant dense<0xFF800000> : vector<4x8xf32>
      %26 = vector.multi_reduction <maximumf>, %24, %cst_19 [2] : vector<4x8x8xf32> to vector<4x8xf32>
      %27 = vector.shape_cast %26 : vector<4x8xf32> to vector<4x8x1xf32>
      %28 = arith.maximumf %25, %27 : vector<4x8x1xf32>
      %29 = arith.subf %25, %28 : vector<4x8x1xf32>
      %30 = math.exp %29 : vector<4x8x1xf32>
      %31 = vector.broadcast %28 : vector<4x8x1xf32> to vector<4x8x8xf32>
      %32 = arith.subf %24, %31 : vector<4x8x8xf32>
      %33 = math.exp %32 : vector<4x8x8xf32>
      %c0_20 = arith.constant 0 : index
      %c0_21 = arith.constant 0 : index
      %c0_22 = arith.constant 0 : index
      %34 = vector.load %arg10[%c0_20, %c0_21, %c0_22] : memref<4x8x1xf32, #tpu.memory_space<vmem>>, vector<4x8x1xf32>
      %35 = arith.mulf %30, %34 : vector<4x8x1xf32>
      %cst_23 = arith.constant dense<0.000000e+00> : vector<4x8xf32>
      %36 = vector.multi_reduction <add>, %33, %cst_23 [2] : vector<4x8x8xf32> to vector<4x8xf32>
      %37 = vector.shape_cast %36 : vector<4x8xf32> to vector<4x8x1xf32>
      %38 = arith.addf %35, %37 : vector<4x8x1xf32>
      %c0_24 = arith.constant 0 : index
      %c0_25 = arith.constant 0 : index
      %c0_26 = arith.constant 0 : index
      %39 = vector.load %arg10[%c0_24, %c0_25, %c0_26] : memref<4x8x1xf32, #tpu.memory_space<vmem>>, vector<4x8x1xf32>
      tpu.vector_store %arg10[%c0_24, %c0_25, %c0_26], %38 {strides = array<i32>} : memref<4x8x1xf32, #tpu.memory_space<vmem>>, vector<4x8x1xf32>,
      %c0_27 = arith.constant 0 : index
      %c0_28 = arith.constant 0 : index
      %c0_29 = arith.constant 0 : index
      %40 = vector.load %arg11[%c0_27, %c0_28, %c0_29] : memref<4x8x8xf32, #tpu.memory_space<vmem>>, vector<4x8x8xf32>
      %41 = vector.broadcast %30 : vector<4x8x1xf32> to vector<4x8x8xf32>
      %42 = arith.mulf %41, %40 : vector<4x8x8xf32>
      %43 = arith.truncf %33 : vector<4x8x8xf32> to vector<4x8x8xbf16>
      %c0_30 = arith.constant 0 : index
      %c0_31 = arith.constant 0 : index
      %c0_32 = arith.constant 0 : index
      %c0_33 = arith.constant 0 : index
      %44 = vector.load %arg5[%c0_30, %c0_31, %c0_32, %c0_33] : memref<1x4x8x8xbf16, #tpu.memory_space<vmem>>, vector<1x4x8x8xbf16>
      %45 = vector.shape_cast %44 : vector<1x4x8x8xbf16> to vector<4x8x8xbf16>
      "tpu.trace_start"() <{level = 10 : i32, message = "hqk,hkd->hqd"}> : () -> ()
      %cst_34 = arith.constant dense<0.000000e+00> : vector<4x8x8xf32>
      %46 = tpu.matmul %43, %45, %cst_34 {dimension_numbers = #tpu.dot_dimension_numbers<[2], [1], [1], [2], [0, 0, 0, 1, 1, 2], [0], [0]>} : vector<4x8x8xbf16>, vector<4x8x8xbf16>, vector<4x8x8xf32> -> vector<4x8x8xf32>
      "tpu.trace_stop"() : () -> ()
      %47 = arith.addf %42, %46 : vector<4x8x8xf32>
      %c0_35 = arith.constant 0 : index
      %c0_36 = arith.constant 0 : index
      %c0_37 = arith.constant 0 : index
      %48 = vector.load %arg11[%c0_35, %c0_36, %c0_37] : memref<4x8x8xf32, #tpu.memory_space<vmem>>, vector<4x8x8xf32>
      tpu.vector_store %arg11[%c0_35, %c0_36, %c0_37], %47 {strides = array<i32>} : memref<4x8x8xf32, #tpu.memory_space<vmem>>, vector<4x8x8xf32>,
      %c0_38 = arith.constant 0 : index
      %c0_39 = arith.constant 0 : index
      %c0_40 = arith.constant 0 : index
      %49 = vector.load %arg9[%c0_38, %c0_39, %c0_40] : memref<4x8x1xf32, #tpu.memory_space<vmem>>, vector<4x8x1xf32>
      tpu.vector_store %arg9[%c0_38, %c0_39, %c0_40], %28 {strides = array<i32>} : memref<4x8x1xf32, #tpu.memory_space<vmem>>, vector<4x8x1xf32>,
    } else {
    }
    %12 = arith.cmpi sle, %3, %2 : i32
    %13 = arith.cmpi sgt, %5, %0 : i32
    %14 = arith.andi %12, %13 : i1
    %15 = arith.extui %14 : i1 to i32
    %c0_i32_6 = arith.constant 0 : i32
    %16 = arith.cmpi ne, %15, %c0_i32_6 : i32
    scf.if %16 {
      %c0 = arith.constant 0 : index
      %c0_9 = arith.constant 0 : index
      %c0_10 = arith.constant 0 : index
      %c0_11 = arith.constant 0 : index
      %20 = vector.load %arg3[%c0, %c0_9, %c0_10, %c0_11] : memref<1x4x8x8xbf16, #tpu.memory_space<vmem>>, vector<1x4x8x8xbf16>
      %21 = vector.shape_cast %20 : vector<1x4x8x8xbf16> to vector<4x8x8xbf16>
      %c0_12 = arith.constant 0 : index
      %c0_13 = arith.constant 0 : index
      %c0_14 = arith.constant 0 : index
      %c0_15 = arith.constant 0 : index
      %22 = vector.load %arg4[%c0_12, %c0_13, %c0_14, %c0_15] : memref<1x4x8x8xbf16, #tpu.memory_space<vmem>>, vector<1x4x8x8xbf16>
      %23 = vector.shape_cast %22 : vector<1x4x8x8xbf16> to vector<4x8x8xbf16>
      "tpu.trace_start"() <{level = 10 : i32, message = "hqd,hkd->hqk"}> : () -> ()
      %cst = arith.constant dense<0.000000e+00> : vector<4x8x8xf32>
      %24 = tpu.matmul %21, %23, %cst {dimension_numbers = #tpu.dot_dimension_numbers<[2], [2], [1], [1], [0, 0, 0, 1, 1, 1], [0], [0]>} : vector<4x8x8xbf16>, vector<4x8x8xbf16>, vector<4x8x8xf32> -> vector<4x8x8xf32>
      "tpu.trace_stop"() : () -> ()
      %25 = tpu.iota {dimensions = array<i32: 1>} : vector<1x8x8xi32>
      %26 = vector.broadcast %0 : i32 to vector<1x8x8xi32>
      %27 = arith.addi %26, %25 : vector<1x8x8xi32>
      %28 = tpu.iota {dimensions = array<i32: 2>} : vector<1x8x8xi32>
      %29 = vector.broadcast %3 : i32 to vector<1x8x8xi32>
      %30 = arith.addi %29, %28 : vector<1x8x8xi32>
      %31 = arith.cmpi sle, %30, %27 : vector<1x8x8xi32>
      %cst_16 = arith.constant -1.000000e+30 : f32
      %32 = vector.shape_cast %31 : vector<1x8x8xi1> to vector<1x8x8xi1>
      %33 = vector.broadcast %32 : vector<1x8x8xi1> to vector<4x8x8xi1>
      %34 = vector.broadcast %cst_16 : f32 to vector<4x8x8xf32>
      %35 = arith.select %33, %24, %34 : vector<4x8x8xi1>, vector<4x8x8xf32>
      %c0_17 = arith.constant 0 : index
      %c0_18 = arith.constant 0 : index
      %c0_19 = arith.constant 0 : index
      %36 = vector.load %arg9[%c0_17, %c0_18, %c0_19] : memref<4x8x1xf32, #tpu.memory_space<vmem>>, vector<4x8x1xf32>
      %cst_20 = arith.constant dense<0xFF800000> : vector<4x8xf32>
      %37 = vector.multi_reduction <maximumf>, %35, %cst_20 [2] : vector<4x8x8xf32> to vector<4x8xf32>
      %38 = vector.shape_cast %37 : vector<4x8xf32> to vector<4x8x1xf32>
      %39 = arith.maximumf %36, %38 : vector<4x8x1xf32>
      %40 = arith.subf %36, %39 : vector<4x8x1xf32>
      %41 = math.exp %40 : vector<4x8x1xf32>
      %42 = vector.broadcast %39 : vector<4x8x1xf32> to vector<4x8x8xf32>
      %43 = arith.subf %35, %42 : vector<4x8x8xf32>
      %44 = math.exp %43 : vector<4x8x8xf32>
      %c0_21 = arith.constant 0 : index
      %c0_22 = arith.constant 0 : index
      %c0_23 = arith.constant 0 : index
      %45 = vector.load %arg10[%c0_21, %c0_22, %c0_23] : memref<4x8x1xf32, #tpu.memory_space<vmem>>, vector<4x8x1xf32>
      %46 = arith.mulf %41, %45 : vector<4x8x1xf32>
      %cst_24 = arith.constant dense<0.000000e+00> : vector<4x8xf32>
      %47 = vector.multi_reduction <add>, %44, %cst_24 [2] : vector<4x8x8xf32> to vector<4x8xf32>
      %48 = vector.shape_cast %47 : vector<4x8xf32> to vector<4x8x1xf32>
      %49 = arith.addf %46, %48 : vector<4x8x1xf32>
      %c0_25 = arith.constant 0 : index
      %c0_26 = arith.constant 0 : index
      %c0_27 = arith.constant 0 : index
      %50 = vector.load %arg10[%c0_25, %c0_26, %c0_27] : memref<4x8x1xf32, #tpu.memory_space<vmem>>, vector<4x8x1xf32>
      tpu.vector_store %arg10[%c0_25, %c0_26, %c0_27], %49 {strides = array<i32>} : memref<4x8x1xf32, #tpu.memory_space<vmem>>, vector<4x8x1xf32>,
      %c0_28 = arith.constant 0 : index
      %c0_29 = arith.constant 0 : index
      %c0_30 = arith.constant 0 : index
      %51 = vector.load %arg11[%c0_28, %c0_29, %c0_30] : memref<4x8x8xf32, #tpu.memory_space<vmem>>, vector<4x8x8xf32>
      %52 = vector.broadcast %41 : vector<4x8x1xf32> to vector<4x8x8xf32>
      %53 = arith.mulf %52, %51 : vector<4x8x8xf32>
      %54 = arith.truncf %44 : vector<4x8x8xf32> to vector<4x8x8xbf16>
      %c0_31 = arith.constant 0 : index
      %c0_32 = arith.constant 0 : index
      %c0_33 = arith.constant 0 : index
      %c0_34 = arith.constant 0 : index
      %55 = vector.load %arg5[%c0_31, %c0_32, %c0_33, %c0_34] : memref<1x4x8x8xbf16, #tpu.memory_space<vmem>>, vector<1x4x8x8xbf16>
      %56 = vector.shape_cast %55 : vector<1x4x8x8xbf16> to vector<4x8x8xbf16>
      "tpu.trace_start"() <{level = 10 : i32, message = "hqk,hkd->hqd"}> : () -> ()
      %cst_35 = arith.constant dense<0.000000e+00> : vector<4x8x8xf32>
      %57 = tpu.matmul %54, %56, %cst_35 {dimension_numbers = #tpu.dot_dimension_numbers<[2], [1], [1], [2], [0, 0, 0, 1, 1, 2], [0], [0]>} : vector<4x8x8xbf16>, vector<4x8x8xbf16>, vector<4x8x8xf32> -> vector<4x8x8xf32>
      "tpu.trace_stop"() : () -> ()
      %58 = arith.addf %53, %57 : vector<4x8x8xf32>
      %c0_36 = arith.constant 0 : index
      %c0_37 = arith.constant 0 : index
      %c0_38 = arith.constant 0 : index
      %59 = vector.load %arg11[%c0_36, %c0_37, %c0_38] : memref<4x8x8xf32, #tpu.memory_space<vmem>>, vector<4x8x8xf32>
      tpu.vector_store %arg11[%c0_36, %c0_37, %c0_38], %58 {strides = array<i32>} : memref<4x8x8xf32, #tpu.memory_space<vmem>>, vector<4x8x8xf32>,
      %c0_39 = arith.constant 0 : index
      %c0_40 = arith.constant 0 : index
      %c0_41 = arith.constant 0 : index
      %60 = vector.load %arg9[%c0_39, %c0_40, %c0_41] : memref<4x8x1xf32, #tpu.memory_space<vmem>>, vector<4x8x1xf32>
      tpu.vector_store %arg9[%c0_39, %c0_40, %c0_41], %39 {strides = array<i32>} : memref<4x8x1xf32, #tpu.memory_space<vmem>>, vector<4x8x1xf32>,
    } else {
    }
    %c0_i32_7 = arith.constant 0 : i32
    %17 = arith.cmpi eq, %arg2, %c0_i32_7 : i32
    %18 = arith.extui %17 : i1 to i32
    %c0_i32_8 = arith.constant 0 : i32
    %19 = arith.cmpi ne, %18, %c0_i32_8 : i32
    scf.if %19 {
      %c0 = arith.constant 0 : index
      %c0_9 = arith.constant 0 : index
      %c0_10 = arith.constant 0 : index
      %20 = vector.load %arg10[%c0, %c0_9, %c0_10] : memref<4x8x1xf32, #tpu.memory_space<vmem>>, vector<4x8x1xf32>
      %21 = tpu.reciprocal %20 {approx = true} : vector<4x8x1xf32> -> vector<4x8x1xf32>
      %c0_11 = arith.constant 0 : index
      %c0_12 = arith.constant 0 : index
      %c0_13 = arith.constant 0 : index
      %22 = vector.load %arg11[%c0_11, %c0_12, %c0_13] : memref<4x8x8xf32, #tpu.memory_space<vmem>>, vector<4x8x8xf32>
      %23 = vector.broadcast %21 : vector<4x8x1xf32> to vector<4x8x8xf32>
      %24 = arith.mulf %22, %23 : vector<4x8x8xf32>
      %25 = vector.extract_strided_slice %24 {offsets = [0, 0, 0], sizes = [1, 8, 8], strides = [1, 1, 1]} : vector<4x8x8xf32> to vector<1x8x8xf32>
      %26 = vector.shape_cast %25 : vector<1x8x8xf32> to vector<8x8xf32>
      %27 = vector.extract_strided_slice %24 {offsets = [1, 0, 0], sizes = [1, 8, 8], strides = [1, 1, 1]} : vector<4x8x8xf32> to vector<1x8x8xf32>
      %28 = vector.shape_cast %27 : vector<1x8x8xf32> to vector<8x8xf32>
      %29 = vector.extract_strided_slice %24 {offsets = [2, 0, 0], sizes = [1, 8, 8], strides = [1, 1, 1]} : vector<4x8x8xf32> to vector<1x8x8xf32>
      %30 = vector.shape_cast %29 : vector<1x8x8xf32> to vector<8x8xf32>
      %31 = vector.extract_strided_slice %24 {offsets = [3, 0, 0], sizes = [1, 8, 8], strides = [1, 1, 1]} : vector<4x8x8xf32> to vector<1x8x8xf32>
      %32 = vector.shape_cast %31 : vector<1x8x8xf32> to vector<8x8xf32>
      %33 = tpu.concatenate %26, %28, %30, %32 in 1 : vector<8x8xf32>, vector<8x8xf32>, vector<8x8xf32>, vector<8x8xf32> -> vector<8x32xf32>
      %34 = arith.truncf %33 : vector<8x32xf32> to vector<8x32xbf16>
      %c0_14 = arith.constant 0 : index
      %c0_15 = arith.constant 0 : index
      %35 = vector.load %arg6[%c0_14, %c0_15] : memref<32x32xbf16, #tpu.memory_space<vmem>>, vector<32x32xbf16>
      %cst = arith.constant dense<0.000000e+00> : vector<8x32xf32>
      %36 = tpu.matmul %34, %35, %cst {dimension_numbers = #tpu.dot_dimension_numbers<[1], [0], [0], [1], [0, 0, 1, 1], [], []>} : vector<8x32xbf16>, vector<32x32xbf16>, vector<8x32xf32> -> vector<8x32xf32>
      %c0_16 = arith.constant 0 : index
      %c0_17 = arith.constant 0 : index
      %37 = vector.load %arg7[%c0_16, %c0_17] : memref<1x32xf32, #tpu.memory_space<vmem>>, vector<1x32xf32>
      %38 = vector.broadcast %37 : vector<1x32xf32> to vector<8x32xf32>
      %39 = arith.addf %36, %38 : vector<8x32xf32>
      %c0_18 = arith.constant 0 : index
      %c0_19 = arith.constant 0 : index
      %c0_20 = arith.constant 0 : index
      %40 = vector.load %arg8[%c0_18, %c0_19, %c0_20] : memref<1x8x32xf32, #tpu.memory_space<vmem>>, vector<1x8x32xf32>
      %41 = vector.shape_cast %40 : vector<1x8x32xf32> to vector<8x32xf32>
      %42 = vector.shape_cast %39 : vector<8x32xf32> to vector<1x8x32xf32>
      tpu.vector_store %arg8[%c0_18, %c0_19, %c0_20], %42 {strides = array<i32>} : memref<1x8x32xf32, #tpu.memory_space<vmem>>, vector<1x8x32xf32>,
    } else {
    }
    return
  }
  func.func @transform_0(%arg0: i32, %arg1: i32, %arg2: i32) -> (i32, i32, i32, i32) {
    %c0_i32 = arith.constant 0 : i32
    %c0_i32_0 = arith.constant 0 : i32
    %c0_i32_1 = arith.constant 0 : i32
    return %arg0, %c0_i32, %arg1, %c0_i32_0 : i32, i32, i32, i32
  }
  func.func @transform_1(%arg0: i32, %arg1: i32, %arg2: i32) -> (i32, i32, i32, i32) {
    %c0_i32 = arith.constant 0 : i32
    %c0_i32_0 = arith.constant 0 : i32
    %c0_i32_1 = arith.constant 0 : i32
    return %arg0, %c0_i32, %arg2, %c0_i32_0 : i32, i32, i32, i32
  }
  func.func @transform_2(%arg0: i32, %arg1: i32, %arg2: i32) -> (i32, i32, i32, i32) {
    %c0_i32 = arith.constant 0 : i32
    %c0_i32_0 = arith.constant 0 : i32
    %c0_i32_1 = arith.constant 0 : i32
    return %arg0, %c0_i32, %arg2, %c0_i32_0 : i32, i32, i32, i32
  }
  func.func @transform_3(%arg0: i32, %arg1: i32, %arg2: i32) -> (i32, i32) {
    %c0_i32 = arith.constant 0 : i32
    %c0_i32_0 = arith.constant 0 : i32
    %c0_i32_1 = arith.constant 0 : i32
    return %c0_i32, %c0_i32_0 : i32, i32
  }
  func.func @transform_4(%arg0: i32, %arg1: i32, %arg2: i32) -> (i32, i32) {
    %c0_i32 = arith.constant 0 : i32
    %c0_i32_0 = arith.constant 0 : i32
    %c0_i32_1 = arith.constant 0 : i32
    return %c0_i32, %c0_i32_0 : i32, i32
  }
  func.func @transform_5(%arg0: i32, %arg1: i32, %arg2: i32) -> (i32, i32, i32) {
    %c0_i32 = arith.constant 0 : i32
    %c0_i32_0 = arith.constant 0 : i32
    return %arg0, %arg1, %c0_i32 : i32, i32, i32
  }
}

</mosaic_0001>

<llo_original>
// kernel: tpu_custom_call.1
$region0: #{tpu_custom_call.1}
  #allocation0 [shape = 'u32[]', space=smem, size = 0x4, offset = 0x4, fixed_abs, tag = 'smem constant byte address 0x4 - core index']
  #allocation1 [shape = 'u32[144,128]{1,0:T(1,128)}', space=vmem, size = 0x12000, scoped, tag = 'internal scratch']
  #allocation2 [shape = 'f32[4,8,1]{2,1,0:T(8,128)}', space=vmem, size = 0x4000, scoped, tag = 'scratch operand']
  #allocation3 [shape = 'f32[4,8,1]{2,1,0:T(8,128)}', space=vmem, size = 0x4000, scoped, tag = 'scratch operand']
  #allocation4 [shape = 'f32[4,8,8]{2,1,0:T(8,128)}', space=vmem, size = 0x4000, scoped, tag = 'scratch operand']
  %s0 = inlined_call_operand.hbm [shape: bf16[2,4,8,8], index: 0, kind: input, shape index: {}]
  %s1 = inlined_call_operand.hbm [shape: bf16[2,4,8,8], index: 1, kind: input, shape index: {}]
  %s2 = inlined_call_operand.hbm [shape: bf16[2,4,8,8], index: 2, kind: input, shape index: {}]
  %s3 = inlined_call_operand.hbm [shape: bf16[32,32], index: 3, kind: input, shape index: {}]
  %s4 = inlined_call_operand.vmem [shape: f32[1,32], index: 4, kind: input, shape index: {}]
  %s5 = inlined_call_operand.hbm [shape: f32[2,8,32], index: 5, kind: output, shape index: {}]
  %s6 = sld [smem:[#allocation0]]
  $region85: #{tpu_custom_call.1} parent=0
    _
  %s8 = ssub.s32 1, %s6
  %s9 = scalar_select 0, %s8, %s6
  $region1: #{tpu_custom_call.1} parent=0
    #allocation5 [shape = 'u8[16384]{0}', space=vmem, size = 0x4000, scoped, tag = 'input window, operand 0']
    #allocation6 [shape = 's32[2]{0}', space=sflag, size = 0x8, scoped, tag = 'scoped memory for tpu_custom_call.1']
    #allocation7 [shape = 's32[2]{0}', space=sflag, size = 0x8, scoped, tag = 'scoped memory for tpu_custom_call.1']
    #allocation8 [shape = 'u8[16384]{0}', space=vmem, size = 0x4000, scoped, tag = 'input window, operand 1']
    #allocation9 [shape = 's32[2]{0}', space=sflag, size = 0x8, scoped, tag = 'scoped memory for tpu_custom_call.1']
    #allocation10 [shape = 'u8[16384]{0}', space=vmem, size = 0x4000, scoped, tag = 'input window, operand 2']
    #allocation11 [shape = 'u8[8192]{0}', space=vmem, size = 0x2000, scoped, tag = 'input window, operand 3, single buffered']
    #allocation12 [shape = 's32[1]{0}', space=sflag, size = 0x4, scoped, tag = 'scoped memory for tpu_custom_call.1']
    #allocation13 [shape = 'u8[8192]{0}', space=vmem, size = 0x2000, scoped, tag = 'output window, operand 0']
    %10 = vsyncpa [#allocation6], 0
    %s11 = scalar_lea.sflag [#allocation6], 1
    %12 = vsyncpa %s11, 0
    %13 = vsyncpa [#allocation9], 0
    %s14 = scalar_lea.sflag [#allocation9], 1
    %15 = vsyncpa %s14, 0
    %16 = vsyncpa [#allocation12], 0
    %17 = vsyncpa [#allocation7], 0
    %s18 = scalar_lea.sflag [#allocation7], 1
    %19 = vsyncpa %s18, 0
    loop: start=0, step=1, limit=4
    $region2: #{tpu_custom_call.1} parent=1 // loop_pre_header
      _
    $region3: #{tpu_custom_call.1} parent=1 // loop_header
      %s21 = sphi 0, %s25
      %p22 = scmp.ge.s32.totalorder %s21, 4
      %s28 = sphi 0, %s47
      %s29 = sphi 0, %s43
      %s30 = sphi 0, %s39
      %s31 = sphi 0, %s28
      %s32 = sphi 0, %s29
      %s33 = sphi 0, %s30
      %s34 = sphi 0, %s31
      %s35 = sphi 0, %s32
      %s36 = sphi 0, %s33
      %s52 = sphi 0, %s54
      %s55 = sphi 0, %s52
      %s56 = sphi 0, %s55
      %s72 = sphi 0, %s56
      %s80 = sphi 0, %s82
      %s83 = sphi 0, %s80
      %s84 = sphi 0, %s83
      %s100 = sphi 0, %s84
      %s108 = sphi 0, %s110
      %s111 = sphi 0, %s108
      %s112 = sphi 0, %s111
      %s128 = sphi 0, %s112
      %s132 = sphi 0, %s132
      %s134 = sphi 0, %s132
      %s135 = sphi 0, %s134
      %s149 = sphi 0, %s135
      %s153 = sphi 0, %s153
      %s155 = sphi 0, %s153
      %s156 = sphi 0, %s155
      %s170 = sphi 0, %s156
      %s178 = sphi 0, %s180
      %s181 = sphi 0, %s178
      %s182 = sphi 0, %s181
      %s198 = sphi 0, %s182
    $region4: #{tpu_custom_call.1} parent=1 // loop_header_branch
      %24 = sbr.rel (%p22) target = $region8
    $region5: #{tpu_custom_call.1} parent=1 // loop_body
      %s26 = ssub.s32 %s21, 1
      %s27 = ssub.s32 %s21, 2
      %s37 = sadd.s32 1, %s30
      %p38 = scmp.ge.s32.totalorder %s37, 1
      %s39 = scalar_select %p38, 0, %s37
      %s40 = sadd.s32 1, %s29
      %s41 = scalar_select %p38, %s40, %s29
      %p42 = scmp.ge.s32.totalorder %s41, 1
      %s43 = scalar_select %p42, 0, %s41
      %s44 = sadd.s32 1, %s28
      %s45 = scalar_select %p42, %s44, %s28
      %p46 = scmp.ge.s32.totalorder %s45, 2
      %s47 = scalar_select %p46, 0, %s45
      %s48 = ssub.s32 %s28, %s47
      %s49 = ssub.s32 %s29, %s43
      %s50 = sor.u32 %s48, %s49
      %p51 = scmp.eq.s32.totalorder %s50, 0
      %s53 = sadd.s32 %s52, 1
      %s54 = scalar_select %p51, %s52, %s53
      %p57 = pneg %p51
      %p58 = scmp.eq.s32.totalorder %s21, 1
      %p59 = por %p57, %p58
      %p60 = scmp.ne.s32.totalorder %s52, %s55
      %p61 = scmp.eq.s32.totalorder %s21, 0
      %p62 = por %p60, %p61
      %p63 = scmp.ne.s32.totalorder %s52, %s55
      %p64 = scmp.eq.s32.totalorder %s26, 1
      %p65 = por %p63, %p64
      %p66 = scmp.ne.s32.totalorder %s55, %s56
      %p67 = scmp.eq.s32.totalorder %s26, 0
      %p68 = por %p66, %p67
      %p69 = scmp.ne.s32.totalorder %s55, %s56
      %p70 = scmp.eq.s32.totalorder %s27, 1
      %p71 = por %p69, %p70
      %p73 = scmp.ne.s32.totalorder %s56, %s72
      %p74 = scmp.eq.s32.totalorder %s27, 0
      %p75 = por %p73, %p74
      %s76 = ssub.s32 %s28, %s47
      %s77 = ssub.s32 %s30, %s39
      %s78 = sor.u32 %s76, %s77
      %p79 = scmp.eq.s32.totalorder %s78, 0
      %s81 = sadd.s32 %s80, 1
      %s82 = scalar_select %p79, %s80, %s81
      %p85 = pneg %p79
      %p86 = scmp.eq.s32.totalorder %s21, 1
      %p87 = por %p85, %p86
      %p88 = scmp.ne.s32.totalorder %s80, %s83
      %p89 = scmp.eq.s32.totalorder %s21, 0
      %p90 = por %p88, %p89
      %p91 = scmp.ne.s32.totalorder %s80, %s83
      %p92 = scmp.eq.s32.totalorder %s26, 1
      %p93 = por %p91, %p92
      %p94 = scmp.ne.s32.totalorder %s83, %s84
      %p95 = scmp.eq.s32.totalorder %s26, 0
      %p96 = por %p94, %p95
      %p97 = scmp.ne.s32.totalorder %s83, %s84
      %p98 = scmp.eq.s32.totalorder %s27, 1
      %p99 = por %p97, %p98
      %p101 = scmp.ne.s32.totalorder %s84, %s100
      %p102 = scmp.eq.s32.totalorder %s27, 0
      %p103 = por %p101, %p102
      %s104 = ssub.s32 %s28, %s47
      %s105 = ssub.s32 %s30, %s39
      %s106 = sor.u32 %s104, %s105
      %p107 = scmp.eq.s32.totalorder %s106, 0
      %s109 = sadd.s32 %s108, 1
      %s110 = scalar_select %p107, %s108, %s109
      %p113 = pneg %p107
      %p114 = scmp.eq.s32.totalorder %s21, 1
      %p115 = por %p113, %p114
      %p116 = scmp.ne.s32.totalorder %s108, %s111
      %p117 = scmp.eq.s32.totalorder %s21, 0
      %p118 = por %p116, %p117
      %p119 = scmp.ne.s32.totalorder %s108, %s111
      %p120 = scmp.eq.s32.totalorder %s26, 1
      %p121 = por %p119, %p120
      %p122 = scmp.ne.s32.totalorder %s111, %s112
      %p123 = scmp.eq.s32.totalorder %s26, 0
      %p124 = por %p122, %p123
      %p125 = scmp.ne.s32.totalorder %s111, %s112
      %p126 = scmp.eq.s32.totalorder %s27, 1
      %p127 = por %p125, %p126
      %p129 = scmp.ne.s32.totalorder %s112, %s128
      %p130 = scmp.eq.s32.totalorder %s27, 0
      %p131 = por %p129, %p130
      %s133 = sadd.s32 %s132, 1
      %p136 = scmp.eq.s32.totalorder %s21, 1
      %p137 = scmp.ne.s32.totalorder %s132, %s134
      %p138 = scmp.eq.s32.totalorder %s21, 0
      %p139 = por %p137, %p138
      %p140 = scmp.ne.s32.totalorder %s132, %s134
      %p141 = scmp.eq.s32.totalorder %s26, 1
      %p142 = por %p140, %p141
      %p143 = scmp.ne.s32.totalorder %s134, %s135
      %p144 = scmp.eq.s32.totalorder %s26, 0
      %p145 = por %p143, %p144
      %p146 = scmp.ne.s32.totalorder %s134, %s135
      %p147 = scmp.eq.s32.totalorder %s27, 1
      %p148 = por %p146, %p147
      %p150 = scmp.ne.s32.totalorder %s135, %s149
      %p151 = scmp.eq.s32.totalorder %s27, 0
      %p152 = por %p150, %p151
      %s154 = sadd.s32 %s153, 1
      %p157 = scmp.eq.s32.totalorder %s21, 1
      %p158 = scmp.ne.s32.totalorder %s153, %s155
      %p159 = scmp.eq.s32.totalorder %s21, 0
      %p160 = por %p158, %p159
      %p161 = scmp.ne.s32.totalorder %s153, %s155
      %p162 = scmp.eq.s32.totalorder %s26, 1
      %p163 = por %p161, %p162
      %p164 = scmp.ne.s32.totalorder %s155, %s156
      %p165 = scmp.eq.s32.totalorder %s26, 0
      %p166 = por %p164, %p165
      %p167 = scmp.ne.s32.totalorder %s155, %s156
      %p168 = scmp.eq.s32.totalorder %s27, 1
      %p169 = por %p167, %p168
      %p171 = scmp.ne.s32.totalorder %s156, %s170
      %p172 = scmp.eq.s32.totalorder %s27, 0
      %p173 = por %p171, %p172
      %s174 = ssub.s32 %s28, %s47
      %s175 = ssub.s32 %s29, %s43
      %s176 = sor.u32 %s174, %s175
      %p177 = scmp.eq.s32.totalorder %s176, 0
      %s179 = sadd.s32 %s178, 1
      %s180 = scalar_select %p177, %s178, %s179
      %p183 = pneg %p177
      %p184 = scmp.eq.s32.totalorder %s21, 1
      %p185 = por %p183, %p184
      %p186 = scmp.ne.s32.totalorder %s178, %s181
      %p187 = scmp.eq.s32.totalorder %s21, 0
      %p188 = por %p186, %p187
      %p189 = scmp.ne.s32.totalorder %s178, %s181
      %p190 = scmp.eq.s32.totalorder %s26, 1
      %p191 = por %p189, %p190
      %p192 = scmp.ne.s32.totalorder %s181, %s182
      %p193 = scmp.eq.s32.totalorder %s26, 0
      %p194 = por %p192, %p193
      %p195 = scmp.ne.s32.totalorder %s181, %s182
      %p196 = scmp.eq.s32.totalorder %s27, 1
      %p197 = por %p195, %p196
      %p199 = scmp.ne.s32.totalorder %s182, %s198
      %p200 = scmp.eq.s32.totalorder %s27, 0
      %p201 = por %p199, %p200
      %p202 = scmp.le.s32.totalorder 1, %s21
      %p203 = scmp.lt.s32.totalorder %s21, 3
      %p204 = pnand %p202, %p203
      %p205 = pneg %p204
      // Predicated region
      $region9: #{tpu_custom_call.1} parent=5 // pred_check
        _
      $region10: #{tpu_custom_call.1} parent=5 // pred_check_branch
        %207 = sbr.rel (%p204) target = $region12
      $region11: #{tpu_custom_call.1} parent=5 // pred_region
        %s208 = ssub.s32 %s21, 1
        // Predicated region
        $region13: #{tpu_custom_call.1} parent=11 // pred_check
          %p209 = pneg %p145
        $region14: #{tpu_custom_call.1} parent=11 // pred_check_branch
          %211 = sbr.rel (%p209) target = $region16
        $region15: #{tpu_custom_call.1} parent=11 // pred_region
          %s213 = ssub.s32 256, 256
          %214 = vsyncadd [#allocation12], %s213
          %s215 = sshll.u32 [#allocation11], 4
          %s216 = int_to_ptr.vmem [resolvable:$true] %s215
          %221 = dma.hbm_to_vmem [thread:$0]  %s3, 256, %s216, [#allocation12], 64, 64, 4
        $region16: #{tpu_custom_call.1} parent=11 // pred_fallthru
          _
        // Predicated region
        $region17: #{tpu_custom_call.1} parent=11 // pred_check
          %p222 = pneg %p166
        $region18: #{tpu_custom_call.1} parent=11 // pred_check_branch
          %224 = sbr.rel (%p222) target = $region20
        $region19: #{tpu_custom_call.1} parent=11 // pred_region
          _
        $region20: #{tpu_custom_call.1} parent=11 // pred_fallthru
          _
      $region12: #{tpu_custom_call.1} parent=5 // pred_fallthru
        _
      %p225 = scmp.lt.s32.totalorder %s21, 2
      // Predicated region
      $region21: #{tpu_custom_call.1} parent=5 // pred_check
        %p226 = pneg %p225
      $region22: #{tpu_custom_call.1} parent=5 // pred_check_branch
        %228 = sbr.rel (%p226) target = $region24
      $region23: #{tpu_custom_call.1} parent=5 // pred_region
        // Predicated region
        $region25: #{tpu_custom_call.1} parent=23 // pred_check
          %p229 = pneg %p62
        $region26: #{tpu_custom_call.1} parent=23 // pred_check_branch
          %231 = sbr.rel (%p229) target = $region28
        $region27: #{tpu_custom_call.1} parent=23 // pred_region
          %s232 = sand.u32 %s52, 1
          %s233 = scalar_lea.sflag [#allocation6], %s232
          %s234 = sand.u32 %s52, 1
          %s235 = smul.addr %s234, 16
          %s236 = scalar_lea.vmem [#allocation5], %s235
          %s238 = ssub.s32 256, 256
          %239 = vsyncadd %s233, %s238
          %s240 = smul.addr %s28, 4
          %s241 = sadd.s32 %s29, %s240
          %s242 = smul.addr %s241, 64
          %s243 = scalar_lea.hbm %s0, %s242
          %s244 = sshll.u32 %s236, 4
          %s245 = int_to_ptr.vmem [resolvable:$true] %s244
          %250 = dma.hbm_to_vmem [thread:$0]  %s243, 256, %s245, %s233, 64, 64, 4
        $region28: #{tpu_custom_call.1} parent=23 // pred_fallthru
          _
        // Predicated region
        $region29: #{tpu_custom_call.1} parent=23 // pred_check
          %p251 = pneg %p90
        $region30: #{tpu_custom_call.1} parent=23 // pred_check_branch
          %253 = sbr.rel (%p251) target = $region32
        $region31: #{tpu_custom_call.1} parent=23 // pred_region
          %s254 = sand.u32 %s21, 1
          %s255 = scalar_lea.sflag [#allocation9], %s254
          %s256 = sand.u32 %s80, 1
          %s257 = smul.addr %s256, 16
          %s258 = scalar_lea.vmem [#allocation8], %s257
          %s260 = ssub.s32 256, 256
          %261 = vsyncadd %s255, %s260
          %s262 = smul.addr %s28, 4
          %s263 = sadd.s32 %s30, %s262
          %s264 = smul.addr %s263, 64
          %s265 = scalar_lea.hbm %s1, %s264
          %s266 = sshll.u32 %s258, 4
          %s267 = int_to_ptr.vmem [resolvable:$true] %s266
          %272 = dma.hbm_to_vmem [thread:$0]  %s265, 256, %s267, %s255, 64, 64, 4
        $region32: #{tpu_custom_call.1} parent=23 // pred_fallthru
          _
        // Predicated region
        $region33: #{tpu_custom_call.1} parent=23 // pred_check
          %p273 = pneg %p118
        $region34: #{tpu_custom_call.1} parent=23 // pred_check_branch
          %275 = sbr.rel (%p273) target = $region36
        $region35: #{tpu_custom_call.1} parent=23 // pred_region
          %s276 = sand.u32 %s21, 1
          %s277 = scalar_lea.sflag [#allocation9], %s276
          %s278 = sand.u32 %s108, 1
          %s279 = smul.addr %s278, 16
          %s280 = scalar_lea.vmem [#allocation10], %s279
          %s282 = ssub.s32 256, 256
          %283 = vsyncadd %s277, %s282
          %s284 = smul.addr %s28, 4
          %s285 = sadd.s32 %s30, %s284
          %s286 = smul.addr %s285, 64
          %s287 = scalar_lea.hbm %s2, %s286
          %s288 = sshll.u32 %s280, 4
          %s289 = int_to_ptr.vmem [resolvable:$true] %s288
          %294 = dma.hbm_to_vmem [thread:$0]  %s287, 256, %s289, %s277, 64, 64, 4
        $region36: #{tpu_custom_call.1} parent=23 // pred_fallthru
          _
      $region24: #{tpu_custom_call.1} parent=5 // pred_fallthru
        _
      %p295 = scmp.le.s32.totalorder 1, %s21
      %p296 = scmp.lt.s32.totalorder %s21, 3
      %p297 = pnand %p295, %p296
      %p298 = pneg %p297
      // Predicated region
      $region37: #{tpu_custom_call.1} parent=5 // pred_check
        _
      $region38: #{tpu_custom_call.1} parent=5 // pred_check_branch
        %300 = sbr.rel (%p297) target = $region40
      $region39: #{tpu_custom_call.1} parent=5 // pred_region
        %s301 = ssub.s32 %s21, 1
        %s302 = sand.u32 %s55, 1
        %s303 = scalar_lea.sflag [#allocation6], %s302
        %s304 = sand.u32 %s55, 1
        %s305 = smul.addr %s304, 16
        %s306 = scalar_lea.vmem [#allocation5], %s305
        // Predicated region
        $region41: #{tpu_custom_call.1} parent=39 // pred_check
          %p307 = pneg %p68
        $region42: #{tpu_custom_call.1} parent=39 // pred_check_branch
          %309 = sbr.rel (%p307) target = $region44
        $region43: #{tpu_custom_call.1} parent=39 // pred_region
          %310 = dma.done %s303, 256
        $region44: #{tpu_custom_call.1} parent=39 // pred_fallthru
          _
        %s311 = sand.u32 %s26, 1
        %s312 = scalar_lea.sflag [#allocation9], %s311
        %s313 = sand.u32 %s83, 1
        %s314 = smul.addr %s313, 16
        %s315 = scalar_lea.vmem [#allocation8], %s314
        // Predicated region
        $region45: #{tpu_custom_call.1} parent=39 // pred_check
          %p316 = pneg %p96
        $region46: #{tpu_custom_call.1} parent=39 // pred_check_branch
          %318 = sbr.rel (%p316) target = $region48
        $region47: #{tpu_custom_call.1} parent=39 // pred_region
          %319 = dma.done %s312, 256
        $region48: #{tpu_custom_call.1} parent=39 // pred_fallthru
          _
        %s320 = sand.u32 %s26, 1
        %s321 = scalar_lea.sflag [#allocation9], %s320
        %s322 = sand.u32 %s111, 1
        %s323 = smul.addr %s322, 16
        %s324 = scalar_lea.vmem [#allocation10], %s323
        // Predicated region
        $region49: #{tpu_custom_call.1} parent=39 // pred_check
          %p325 = pneg %p124
        $region50: #{tpu_custom_call.1} parent=39 // pred_check_branch
          %327 = sbr.rel (%p325) target = $region52
        $region51: #{tpu_custom_call.1} parent=39 // pred_region
          %328 = dma.done %s321, 256
        $region52: #{tpu_custom_call.1} parent=39 // pred_fallthru
          _
        // Predicated region
        $region53: #{tpu_custom_call.1} parent=39 // pred_check
          %p329 = pneg %p145
        $region54: #{tpu_custom_call.1} parent=39 // pred_check_branch
          %331 = sbr.rel (%p329) target = $region56
        $region55: #{tpu_custom_call.1} parent=39 // pred_region
          %332 = dma.done [#allocation12], 256
        $region56: #{tpu_custom_call.1} parent=39 // pred_fallthru
          _
        %s333 = sand.u32 %s55, 1
        %s334 = scalar_lea.sflag [#allocation6], %s333
        %s335 = sand.u32 %s55, 1
        %s336 = smul.addr %s335, 16
        %s337 = scalar_lea.vmem [#allocation5], %s336
        %p338 = pneg %p68
        %p339 = pneg %p65
        %s340 = sand.u32 %s26, 1
        %s341 = scalar_lea.sflag [#allocation9], %s340
        %s342 = sand.u32 %s83, 1
        %s343 = smul.addr %s342, 16
        %s344 = scalar_lea.vmem [#allocation8], %s343
        %p345 = pneg %p96
        %p346 = pneg %p93
        %s347 = sand.u32 %s26, 1
        %s348 = scalar_lea.sflag [#allocation9], %s347
        %s349 = sand.u32 %s111, 1
        %s350 = smul.addr %s349, 16
        %s351 = scalar_lea.vmem [#allocation10], %s350
        %p352 = pneg %p124
        %p353 = pneg %p121
        %p354 = pneg %p145
        %p355 = pneg %p142
        %p356 = pneg %p166
        %p357 = pneg %p163
        %p358 = pneg %p194
        %p359 = pneg %p191
        %s360 = sand.u32 %s181, 1
        %s361 = scalar_lea.sflag [#allocation7], %s360
        %s362 = sand.u32 %s181, 1
        %s363 = smul.addr %s362, 8
        %s364 = scalar_lea.vmem [#allocation13], %s363
        %s366 = smul.u32 %s32, 8
        %s367 = sadd.s32 %s366, 7
        %s368 = smul.u32 %s33, 8
        %s369 = sadd.s32 %s368, 7
        %p370 = scmp.eq.s32.totalorder %s33, 0
        // Predicated region
        $region57: #{tpu_custom_call.1} parent=39 // pred_check
          %p371 = pneg %p370
        $region58: #{tpu_custom_call.1} parent=39 // pred_check_branch
          %373 = sbr.rel (%p371) target = $region60
        $region59: #{tpu_custom_call.1} parent=39 // pred_region
          %vm374 = vcmask 7168
          %375 = vst.msk [vmem:[#allocation2] sm:$0xff] %vm374, -1e+30
          %376 = vst.msk [vmem:[#allocation2 + $0x8] sm:$0xff] %vm374, -1e+30
          %377 = vst.msk [vmem:[#allocation2 + $0x10] sm:$0xff] %vm374, -1e+30
          %378 = vst.msk [vmem:[#allocation2 + $0x18] sm:$0xff] %vm374, -1e+30
          %379 = vst.msk [vmem:[#allocation3] sm:$0xff] %vm374, 0.0
          %380 = vst.msk [vmem:[#allocation3 + $0x8] sm:$0xff] %vm374, 0.0
          %381 = vst.msk [vmem:[#allocation3 + $0x10] sm:$0xff] %vm374, 0.0
          %382 = vst.msk [vmem:[#allocation3 + $0x18] sm:$0xff] %vm374, 0.0
          %vm383 = vcmask 64512
          %384 = vst.msk [vmem:[#allocation4] sm:$0xff] %vm383, 0.0
          %385 = vst.msk [vmem:[#allocation4 + $0x8] sm:$0xff] %vm383, 0.0
          %386 = vst.msk [vmem:[#allocation4 + $0x10] sm:$0xff] %vm383, 0.0
          %387 = vst.msk [vmem:[#allocation4 + $0x18] sm:$0xff] %vm383, 0.0
        $region60: #{tpu_custom_call.1} parent=39 // pred_fallthru
          _
        %p388 = scmp.le.s32.totalorder %s369, %s366
        // Predicated region
        $region61: #{tpu_custom_call.1} parent=39 // pred_check
          %p389 = pneg %p388
        $region62: #{tpu_custom_call.1} parent=39 // pred_check_branch
          %391 = sbr.rel (%p389) target = $region64
        $region63: #{tpu_custom_call.1} parent=39 // pred_region
          %v392 = vld [vmem:[%s306] sm:$0xf]
          %v393 = vld [vmem:[%s306 + $0x4] sm:$0xf]
          %v394 = vld [vmem:[%s306 + $0x8] sm:$0xf]
          %v395 = vld [vmem:[%s306 + $0xc] sm:$0xf]
          %v396 = vld [vmem:[%s315] sm:$0xf]
          %v397 = vld [vmem:[%s315 + $0x4] sm:$0xf]
          %v398 = vld [vmem:[%s315 + $0x8] sm:$0xf]
          %v399 = vld [vmem:[%s315 + $0xc] sm:$0xf]
          %vm400 = vcmask 64512
          %v402 = vsel %vm400, %v392, 0
          %v405 = vsel %vm400, %v396, 0
          %407 = vmatprep.subr.bf16.mxu0 0
          %408 = vmatpush1.bf16.xpose.msra.mxu0 0
          %409 = vmatprep.subr.bf16.mxu0 0
          %410 = vmatpush1.bf16.xpose.msra.mxu0 0
          %411 = vmatprep.subr.bf16.mxu0 0
          %412 = vmatpush1.bf16.xpose.msra.mxu0 0
          %413 = vmatprep.subr.bf16.mxu0 0
          %414 = vmatpush1.bf16.xpose.msra.mxu0 0
          %415 = vmatprep.subr.bf16.mxu0 0
          %416 = vmatpush1.bf16.xpose.msra.mxu0 0
          %417 = vmatprep.subr.bf16.mxu0 0
          %418 = vmatpush1.bf16.xpose.msra.mxu0 0
          %419 = vmatprep.subr.bf16.mxu0 0
          %420 = vmatpush1.bf16.xpose.msra.mxu0 0
          %421 = vmatprep.subr.bf16.mxu0 0
          %422 = vmatpush1.bf16.xpose.msra.mxu0 %v405
          %423 = vmatprep.subr.bf16.mxu0 0
          %424 = vmatpush2.bf16.xpose.msra.mxu0 0
          %425 = vmatprep.subr.bf16.mxu0 0
          %426 = vmatpush2.bf16.xpose.msra.mxu0 0
          %427 = vmatprep.subr.bf16.mxu0 0
          %428 = vmatpush2.bf16.xpose.msra.mxu0 0
          %429 = vmatprep.subr.bf16.mxu0 0
          %430 = vmatpush2.bf16.xpose.msra.mxu0 0
          %431 = vmatprep.subr.bf16.mxu0 0
          %432 = vmatpush2.bf16.xpose.msra.mxu0 0
          %433 = vmatprep.subr.bf16.mxu0 0
          %434 = vmatpush2.bf16.xpose.msra.mxu0 0
          %435 = vmatprep.subr.bf16.mxu0 0
          %436 = vmatpush2.bf16.xpose.msra.mxu0 0
          %437 = vmatprep.subr.bf16.mxu0 0
          %438 = vmatpush2.bf16.xpose.msra.mxu0 0
          %439 = vmatprep.mubr.bf16.mxu0 0
          %440 = vmatmul.mubr.bf16.gmra.mxu0 %v402
          %v441 = vpop.f32.mrf.mxu0
          %v442 = vadd.f32 0.0, %v441
          %v443 = vpop.f32.mrf.mxu0
          %v444 = vpop.f32.mrf.mxu0
          %v445 = vpop.f32.mrf.mxu0
          %446 = vdwg.mxu0
          %v448 = vsel %vm400, %v393, 0
          %v451 = vsel %vm400, %v397, 0
          %453 = vmatprep.subr.bf16.mxu0 0
          %454 = vmatpush1.bf16.xpose.msra.mxu0 0
          %455 = vmatprep.subr.bf16.mxu0 0
          %456 = vmatpush1.bf16.xpose.msra.mxu0 0
          %457 = vmatprep.subr.bf16.mxu0 0
          %458 = vmatpush1.bf16.xpose.msra.mxu0 0
          %459 = vmatprep.subr.bf16.mxu0 0
          %460 = vmatpush1.bf16.xpose.msra.mxu0 0
          %461 = vmatprep.subr.bf16.mxu0 0
          %462 = vmatpush1.bf16.xpose.msra.mxu0 0
          %463 = vmatprep.subr.bf16.mxu0 0
          %464 = vmatpush1.bf16.xpose.msra.mxu0 0
          %465 = vmatprep.subr.bf16.mxu0 0
          %466 = vmatpush1.bf16.xpose.msra.mxu0 0
          %467 = vmatprep.subr.bf16.mxu0 0
          %468 = vmatpush1.bf16.xpose.msra.mxu0 %v451
          %469 = vmatprep.subr.bf16.mxu0 0
          %470 = vmatpush2.bf16.xpose.msra.mxu0 0
          %471 = vmatprep.subr.bf16.mxu0 0
          %472 = vmatpush2.bf16.xpose.msra.mxu0 0
          %473 = vmatprep.subr.bf16.mxu0 0
          %474 = vmatpush2.bf16.xpose.msra.mxu0 0
          %475 = vmatprep.subr.bf16.mxu0 0
          %476 = vmatpush2.bf16.xpose.msra.mxu0 0
          %477 = vmatprep.subr.bf16.mxu0 0
          %478 = vmatpush2.bf16.xpose.msra.mxu0 0
          %479 = vmatprep.subr.bf16.mxu0 0
          %480 = vmatpush2.bf16.xpose.msra.mxu0 0
          %481 = vmatprep.subr.bf16.mxu0 0
          %482 = vmatpush2.bf16.xpose.msra.mxu0 0
          %483 = vmatprep.subr.bf16.mxu0 0
          %484 = vmatpush2.bf16.xpose.msra.mxu0 0
          %485 = vmatprep.mubr.bf16.mxu0 0
          %486 = vmatmul.mubr.bf16.gmra.mxu0 %v448
          %v487 = vpop.f32.mrf.mxu0
          %v488 = vadd.f32 0.0, %v487
          %v489 = vpop.f32.mrf.mxu0
          %v490 = vpop.f32.mrf.mxu0
          %v491 = vpop.f32.mrf.mxu0
          %492 = vdwg.mxu0
          %v494 = vsel %vm400, %v394, 0
          %v497 = vsel %vm400, %v398, 0
          %499 = vmatprep.subr.bf16.mxu0 0
          %500 = vmatpush1.bf16.xpose.msra.mxu0 0
          %501 = vmatprep.subr.bf16.mxu0 0
          %502 = vmatpush1.bf16.xpose.msra.mxu0 0
          %503 = vmatprep.subr.bf16.mxu0 0
          %504 = vmatpush1.bf16.xpose.msra.mxu0 0
          %505 = vmatprep.subr.bf16.mxu0 0
          %506 = vmatpush1.bf16.xpose.msra.mxu0 0
          %507 = vmatprep.subr.bf16.mxu0 0
          %508 = vmatpush1.bf16.xpose.msra.mxu0 0
          %509 = vmatprep.subr.bf16.mxu0 0
          %510 = vmatpush1.bf16.xpose.msra.mxu0 0
          %511 = vmatprep.subr.bf16.mxu0 0
          %512 = vmatpush1.bf16.xpose.msra.mxu0 0
          %513 = vmatprep.subr.bf16.mxu0 0
          %514 = vmatpush1.bf16.xpose.msra.mxu0 %v497
          %515 = vmatprep.subr.bf16.mxu0 0
          %516 = vmatpush2.bf16.xpose.msra.mxu0 0
          %517 = vmatprep.subr.bf16.mxu0 0
          %518 = vmatpush2.bf16.xpose.msra.mxu0 0
          %519 = vmatprep.subr.bf16.mxu0 0
          %520 = vmatpush2.bf16.xpose.msra.mxu0 0
          %521 = vmatprep.subr.bf16.mxu0 0
          %522 = vmatpush2.bf16.xpose.msra.mxu0 0
          %523 = vmatprep.subr.bf16.mxu0 0
          %524 = vmatpush2.bf16.xpose.msra.mxu0 0
          %525 = vmatprep.subr.bf16.mxu0 0
          %526 = vmatpush2.bf16.xpose.msra.mxu0 0
          %527 = vmatprep.subr.bf16.mxu0 0
          %528 = vmatpush2.bf16.xpose.msra.mxu0 0
          %529 = vmatprep.subr.bf16.mxu0 0
          %530 = vmatpush2.bf16.xpose.msra.mxu0 0
          %531 = vmatprep.mubr.bf16.mxu0 0
          %532 = vmatmul.mubr.bf16.gmra.mxu0 %v494
          %v533 = vpop.f32.mrf.mxu0
          %v534 = vadd.f32 0.0, %v533
          %v535 = vpop.f32.mrf.mxu0
          %v536 = vpop.f32.mrf.mxu0
          %v537 = vpop.f32.mrf.mxu0
          %538 = vdwg.mxu0
          %v540 = vsel %vm400, %v395, 0
          %v543 = vsel %vm400, %v399, 0
          %545 = vmatprep.subr.bf16.mxu0 0
          %546 = vmatpush1.bf16.xpose.msra.mxu0 0
          %547 = vmatprep.subr.bf16.mxu0 0
          %548 = vmatpush1.bf16.xpose.msra.mxu0 0
          %549 = vmatprep.subr.bf16.mxu0 0
          %550 = vmatpush1.bf16.xpose.msra.mxu0 0
          %551 = vmatprep.subr.bf16.mxu0 0
          %552 = vmatpush1.bf16.xpose.msra.mxu0 0
          %553 = vmatprep.subr.bf16.mxu0 0
          %554 = vmatpush1.bf16.xpose.msra.mxu0 0
          %555 = vmatprep.subr.bf16.mxu0 0
          %556 = vmatpush1.bf16.xpose.msra.mxu0 0
          %557 = vmatprep.subr.bf16.mxu0 0
          %558 = vmatpush1.bf16.xpose.msra.mxu0 0
          %559 = vmatprep.subr.bf16.mxu0 0
          %560 = vmatpush1.bf16.xpose.msra.mxu0 %v543
          %561 = vmatprep.subr.bf16.mxu0 0
          %562 = vmatpush2.bf16.xpose.msra.mxu0 0
          %563 = vmatprep.subr.bf16.mxu0 0
          %564 = vmatpush2.bf16.xpose.msra.mxu0 0
          %565 = vmatprep.subr.bf16.mxu0 0
          %566 = vmatpush2.bf16.xpose.msra.mxu0 0
          %567 = vmatprep.subr.bf16.mxu0 0
          %568 = vmatpush2.bf16.xpose.msra.mxu0 0
          %569 = vmatprep.subr.bf16.mxu0 0
          %570 = vmatpush2.bf16.xpose.msra.mxu0 0
          %571 = vmatprep.subr.bf16.mxu0 0
          %572 = vmatpush2.bf16.xpose.msra.mxu0 0
          %573 = vmatprep.subr.bf16.mxu0 0
          %574 = vmatpush2.bf16.xpose.msra.mxu0 0
          %575 = vmatprep.subr.bf16.mxu0 0
          %576 = vmatpush2.bf16.xpose.msra.mxu0 0
          %577 = vmatprep.mubr.bf16.mxu0 0
          %578 = vmatmul.mubr.bf16.gmra.mxu0 %v540
          %v579 = vpop.f32.mrf.mxu0
          %v580 = vadd.f32 0.0, %v579
          %v581 = vpop.f32.mrf.mxu0
          %v582 = vpop.f32.mrf.mxu0
          %v583 = vpop.f32.mrf.mxu0
          %584 = vdwg.mxu0
          %v585 = vld [vmem:[#allocation2] sm:$0xff]
          %v586 = vld [vmem:[#allocation2 + $0x8] sm:$0xff]
          %v587 = vld [vmem:[#allocation2 + $0x10] sm:$0xff]
          %v588 = vld [vmem:[#allocation2 + $0x18] sm:$0xff]
          %v589 = vsel %vm400, %v442, -inf
          %590 = vmax.xlane.f32.xlu0 %v589
          %v591 = vpop.xlane.xlu0 %590
          %v592 = vsel %vm400, %v488, -inf
          %593 = vmax.xlane.f32.xlu0 %v592
          %v594 = vpop.xlane.xlu0 %593
          %v595 = vsel %vm400, %v534, -inf
          %596 = vmax.xlane.f32.xlu0 %v595
          %v597 = vpop.xlane.xlu0 %596
          %v598 = vsel %vm400, %v580, -inf
          %599 = vmax.xlane.f32.xlu0 %v598
          %v600 = vpop.xlane.xlu0 %599
          %v601 = vmax.f32 %v585, %v591
          %v602 = vmax.f32 %v586, %v594
          %v603 = vmax.f32 %v587, %v597
          %v604 = vmax.f32 %v588, %v600
          %v605 = vsub.f32 %v585, %v601
          %v606 = vsub.f32 %v586, %v602
          %v607 = vsub.f32 %v587, %v603
          %v608 = vsub.f32 %v588, %v604
          %v609 = vmul.f32 %v605, 1.442695
          %v610 = vpow.pop %v609
          %v611 = vmul.f32 %v606, 1.442695
          %v612 = vpow.pop %v611
          %v613 = vmul.f32 %v607, 1.442695
          %v614 = vpow.pop %v613
          %v615 = vmul.f32 %v608, 1.442695
          %v616 = vpow.pop %v615
          %618 = vset.pattern.permute.xlu0 0
          %619 = vperm.xlu0 %618, %v601
          %v620 = vpop.permute.xlu0 %619
          %623 = vset.pattern.permute.xlu0 0
          %624 = vperm.xlu0 %623, %v602
          %v625 = vpop.permute.xlu0 %624
          %628 = vset.pattern.permute.xlu0 0
          %629 = vperm.xlu0 %628, %v603
          %v630 = vpop.permute.xlu0 %629
          %633 = vset.pattern.permute.xlu0 0
          %634 = vperm.xlu0 %633, %v604
          %v635 = vpop.permute.xlu0 %634
          %v637 = vsub.f32 %v442, %v620
          %v638 = vsub.f32 %v488, %v625
          %v639 = vsub.f32 %v534, %v630
          %v640 = vsub.f32 %v580, %v635
          %v641 = vmul.f32 %v637, 1.442695
          %v642 = vpow.pop %v641
          %v643 = vmul.f32 %v638, 1.442695
          %v644 = vpow.pop %v643
          %v645 = vmul.f32 %v639, 1.442695
          %v646 = vpow.pop %v645
          %v647 = vmul.f32 %v640, 1.442695
          %v648 = vpow.pop %v647
          %v649 = vld [vmem:[#allocation3] sm:$0xff]
          %v650 = vld [vmem:[#allocation3 + $0x8] sm:$0xff]
          %v651 = vld [vmem:[#allocation3 + $0x10] sm:$0xff]
          %v652 = vld [vmem:[#allocation3 + $0x18] sm:$0xff]
          %v653 = vmul.f32 %v610, %v649
          %v654 = vmul.f32 %v612, %v650
          %v655 = vmul.f32 %v614, %v651
          %v656 = vmul.f32 %v616, %v652
          %v657 = vsel %vm400, %v642, 0.0
          %658 = vadd.xlane.f32.xlu0 %v657
          %v659 = vpop.xlane.xlu0 %658
          %v660 = vsel %vm400, %v644, 0.0
          %661 = vadd.xlane.f32.xlu0 %v660
          %v662 = vpop.xlane.xlu0 %661
          %v663 = vsel %vm400, %v646, 0.0
          %664 = vadd.xlane.f32.xlu0 %v663
          %v665 = vpop.xlane.xlu0 %664
          %v666 = vsel %vm400, %v648, 0.0
          %667 = vadd.xlane.f32.xlu0 %v666
          %v668 = vpop.xlane.xlu0 %667
          %v669 = vadd.f32 %v653, %v659
          %v670 = vadd.f32 %v654, %v662
          %v671 = vadd.f32 %v655, %v665
          %v672 = vadd.f32 %v656, %v668
          %vm673 = vcmask 7168
          %674 = vst.msk [vmem:[#allocation3] sm:$0xff] %vm673, %v669
          %675 = vst.msk [vmem:[#allocation3 + $0x8] sm:$0xff] %vm673, %v670
          %676 = vst.msk [vmem:[#allocation3 + $0x10] sm:$0xff] %vm673, %v671
          %677 = vst.msk [vmem:[#allocation3 + $0x18] sm:$0xff] %vm673, %v672
          %v678 = vld [vmem:[#allocation4] sm:$0xff]
          %v679 = vld [vmem:[#allocation4 + $0x8] sm:$0xff]
          %v680 = vld [vmem:[#allocation4 + $0x10] sm:$0xff]
          %v681 = vld [vmem:[#allocation4 + $0x18] sm:$0xff]
          %683 = vset.pattern.permute.xlu0 0
          %684 = vperm.xlu0 %683, %v610
          %v685 = vpop.permute.xlu0 %684
          %688 = vset.pattern.permute.xlu0 0
          %689 = vperm.xlu0 %688, %v612
          %v690 = vpop.permute.xlu0 %689
          %693 = vset.pattern.permute.xlu0 0
          %694 = vperm.xlu0 %693, %v614
          %v695 = vpop.permute.xlu0 %694
          %698 = vset.pattern.permute.xlu0 0
          %699 = vperm.xlu0 %698, %v616
          %v700 = vpop.permute.xlu0 %699
          %v702 = vmul.f32 %v685, %v678
          %v703 = vmul.f32 %v690, %v679
          %v704 = vmul.f32 %v695, %v680
          %v705 = vmul.f32 %v700, %v681
          %v706 = vpack.c.bf16 %v642, %v642
          %v707 = vpack.c.bf16 %v644, %v644
          %v708 = vpack.c.bf16 %v646, %v646
          %v709 = vpack.c.bf16 %v648, %v648
          %v710 = vld [vmem:[%s324] sm:$0xf]
          %v711 = vld [vmem:[%s324 + $0x4] sm:$0xf]
          %v712 = vld [vmem:[%s324 + $0x8] sm:$0xf]
          %v713 = vld [vmem:[%s324 + $0xc] sm:$0xf]
          %v715 = vsel %vm400, %v706, 0
          %vm717 = vcmask 1043456
          %v719 = vsel %vm717, %v710, 0
          %721 = vmatprep.subr.bf16.mxu0 0
          %722 = vmatpush1.bf16.msra.mxu0 0
          %723 = vmatprep.subr.bf16.mxu0 0
          %724 = vmatpush1.bf16.msra.mxu0 0
          %725 = vmatprep.subr.bf16.mxu0 0
          %726 = vmatpush1.bf16.msra.mxu0 0
          %727 = vmatprep.subr.bf16.mxu0 0
          %728 = vmatpush1.bf16.msra.mxu0 0
          %729 = vmatprep.subr.bf16.mxu0 0
          %730 = vmatpush1.bf16.msra.mxu0 0
          %731 = vmatprep.subr.bf16.mxu0 0
          %732 = vmatpush1.bf16.msra.mxu0 0
          %733 = vmatprep.subr.bf16.mxu0 0
          %734 = vmatpush1.bf16.msra.mxu0 0
          %735 = vmatprep.subr.bf16.mxu0 0
          %736 = vmatpush1.bf16.msra.mxu0 %v719
          %737 = vmatprep.subr.bf16.mxu0 0
          %738 = vmatpush2.bf16.msra.mxu0 0
          %739 = vmatprep.subr.bf16.mxu0 0
          %740 = vmatpush2.bf16.msra.mxu0 0
          %741 = vmatprep.subr.bf16.mxu0 0
          %742 = vmatpush2.bf16.msra.mxu0 0
          %743 = vmatprep.subr.bf16.mxu0 0
          %744 = vmatpush2.bf16.msra.mxu0 0
          %745 = vmatprep.subr.bf16.mxu0 0
          %746 = vmatpush2.bf16.msra.mxu0 0
          %747 = vmatprep.subr.bf16.mxu0 0
          %748 = vmatpush2.bf16.msra.mxu0 0
          %749 = vmatprep.subr.bf16.mxu0 0
          %750 = vmatpush2.bf16.msra.mxu0 0
          %751 = vmatprep.subr.bf16.mxu0 0
          %752 = vmatpush2.bf16.msra.mxu0 0
          %753 = vmatprep.mubr.bf16.mxu0 0
          %754 = vmatmul.mubr.bf16.gmra.mxu0 %v715
          %v755 = vpop.f32.mrf.mxu0
          %v756 = vadd.f32 0.0, %v755
          %v757 = vpop.f32.mrf.mxu0
          %v758 = vpop.f32.mrf.mxu0
          %v759 = vpop.f32.mrf.mxu0
          %760 = vdwg.mxu0
          %v762 = vsel %vm400, %v707, 0
          %v765 = vsel %vm717, %v711, 0
          %767 = vmatprep.subr.bf16.mxu0 0
          %768 = vmatpush1.bf16.msra.mxu0 0
          %769 = vmatprep.subr.bf16.mxu0 0
          %770 = vmatpush1.bf16.msra.mxu0 0
          %771 = vmatprep.subr.bf16.mxu0 0
          %772 = vmatpush1.bf16.msra.mxu0 0
          %773 = vmatprep.subr.bf16.mxu0 0
          %774 = vmatpush1.bf16.msra.mxu0 0
          %775 = vmatprep.subr.bf16.mxu0 0
          %776 = vmatpush1.bf16.msra.mxu0 0
          %777 = vmatprep.subr.bf16.mxu0 0
          %778 = vmatpush1.bf16.msra.mxu0 0
          %779 = vmatprep.subr.bf16.mxu0 0
          %780 = vmatpush1.bf16.msra.mxu0 0
          %781 = vmatprep.subr.bf16.mxu0 0
          %782 = vmatpush1.bf16.msra.mxu0 %v765
          %783 = vmatprep.subr.bf16.mxu0 0
          %784 = vmatpush2.bf16.msra.mxu0 0
          %785 = vmatprep.subr.bf16.mxu0 0
          %786 = vmatpush2.bf16.msra.mxu0 0
          %787 = vmatprep.subr.bf16.mxu0 0
          %788 = vmatpush2.bf16.msra.mxu0 0
          %789 = vmatprep.subr.bf16.mxu0 0
          %790 = vmatpush2.bf16.msra.mxu0 0
          %791 = vmatprep.subr.bf16.mxu0 0
          %792 = vmatpush2.bf16.msra.mxu0 0
          %793 = vmatprep.subr.bf16.mxu0 0
          %794 = vmatpush2.bf16.msra.mxu0 0
          %795 = vmatprep.subr.bf16.mxu0 0
          %796 = vmatpush2.bf16.msra.mxu0 0
          %797 = vmatprep.subr.bf16.mxu0 0
          %798 = vmatpush2.bf16.msra.mxu0 0
          %799 = vmatprep.mubr.bf16.mxu0 0
          %800 = vmatmul.mubr.bf16.gmra.mxu0 %v762
          %v801 = vpop.f32.mrf.mxu0
          %v802 = vadd.f32 0.0, %v801
          %v803 = vpop.f32.mrf.mxu0
          %v804 = vpop.f32.mrf.mxu0
          %v805 = vpop.f32.mrf.mxu0
          %806 = vdwg.mxu0
          %v808 = vsel %vm400, %v708, 0
          %v811 = vsel %vm717, %v712, 0
          %813 = vmatprep.subr.bf16.mxu0 0
          %814 = vmatpush1.bf16.msra.mxu0 0
          %815 = vmatprep.subr.bf16.mxu0 0
          %816 = vmatpush1.bf16.msra.mxu0 0
          %817 = vmatprep.subr.bf16.mxu0 0
          %818 = vmatpush1.bf16.msra.mxu0 0
          %819 = vmatprep.subr.bf16.mxu0 0
          %820 = vmatpush1.bf16.msra.mxu0 0
          %821 = vmatprep.subr.bf16.mxu0 0
          %822 = vmatpush1.bf16.msra.mxu0 0
          %823 = vmatprep.subr.bf16.mxu0 0
          %824 = vmatpush1.bf16.msra.mxu0 0
          %825 = vmatprep.subr.bf16.mxu0 0
          %826 = vmatpush1.bf16.msra.mxu0 0
          %827 = vmatprep.subr.bf16.mxu0 0
          %828 = vmatpush1.bf16.msra.mxu0 %v811
          %829 = vmatprep.subr.bf16.mxu0 0
          %830 = vmatpush2.bf16.msra.mxu0 0
          %831 = vmatprep.subr.bf16.mxu0 0
          %832 = vmatpush2.bf16.msra.mxu0 0
          %833 = vmatprep.subr.bf16.mxu0 0
          %834 = vmatpush2.bf16.msra.mxu0 0
          %835 = vmatprep.subr.bf16.mxu0 0
          %836 = vmatpush2.bf16.msra.mxu0 0
          %837 = vmatprep.subr.bf16.mxu0 0
          %838 = vmatpush2.bf16.msra.mxu0 0
          %839 = vmatprep.subr.bf16.mxu0 0
          %840 = vmatpush2.bf16.msra.mxu0 0
          %841 = vmatprep.subr.bf16.mxu0 0
          %842 = vmatpush2.bf16.msra.mxu0 0
          %843 = vmatprep.subr.bf16.mxu0 0
          %844 = vmatpush2.bf16.msra.mxu0 0
          %845 = vmatprep.mubr.bf16.mxu0 0
          %846 = vmatmul.mubr.bf16.gmra.mxu0 %v808
          %v847 = vpop.f32.mrf.mxu0
          %v848 = vadd.f32 0.0, %v847
          %v849 = vpop.f32.mrf.mxu0
          %v850 = vpop.f32.mrf.mxu0
          %v851 = vpop.f32.mrf.mxu0
          %852 = vdwg.mxu0
          %v854 = vsel %vm400, %v709, 0
          %v857 = vsel %vm717, %v713, 0
          %859 = vmatprep.subr.bf16.mxu0 0
          %860 = vmatpush1.bf16.msra.mxu0 0
          %861 = vmatprep.subr.bf16.mxu0 0
          %862 = vmatpush1.bf16.msra.mxu0 0
          %863 = vmatprep.subr.bf16.mxu0 0
          %864 = vmatpush1.bf16.msra.mxu0 0
          %865 = vmatprep.subr.bf16.mxu0 0
          %866 = vmatpush1.bf16.msra.mxu0 0
          %867 = vmatprep.subr.bf16.mxu0 0
          %868 = vmatpush1.bf16.msra.mxu0 0
          %869 = vmatprep.subr.bf16.mxu0 0
          %870 = vmatpush1.bf16.msra.mxu0 0
          %871 = vmatprep.subr.bf16.mxu0 0
          %872 = vmatpush1.bf16.msra.mxu0 0
          %873 = vmatprep.subr.bf16.mxu0 0
          %874 = vmatpush1.bf16.msra.mxu0 %v857
          %875 = vmatprep.subr.bf16.mxu0 0
          %876 = vmatpush2.bf16.msra.mxu0 0
          %877 = vmatprep.subr.bf16.mxu0 0
          %878 = vmatpush2.bf16.msra.mxu0 0
          %879 = vmatprep.subr.bf16.mxu0 0
          %880 = vmatpush2.bf16.msra.mxu0 0
          %881 = vmatprep.subr.bf16.mxu0 0
          %882 = vmatpush2.bf16.msra.mxu0 0
          %883 = vmatprep.subr.bf16.mxu0 0
          %884 = vmatpush2.bf16.msra.mxu0 0
          %885 = vmatprep.subr.bf16.mxu0 0
          %886 = vmatpush2.bf16.msra.mxu0 0
          %887 = vmatprep.subr.bf16.mxu0 0
          %888 = vmatpush2.bf16.msra.mxu0 0
          %889 = vmatprep.subr.bf16.mxu0 0
          %890 = vmatpush2.bf16.msra.mxu0 0
          %891 = vmatprep.mubr.bf16.mxu0 0
          %892 = vmatmul.mubr.bf16.gmra.mxu0 %v854
          %v893 = vpop.f32.mrf.mxu0
          %v894 = vadd.f32 0.0, %v893
          %v895 = vpop.f32.mrf.mxu0
          %v896 = vpop.f32.mrf.mxu0
          %v897 = vpop.f32.mrf.mxu0
          %898 = vdwg.mxu0
          %v899 = vadd.f32 %v702, %v756
          %v900 = vadd.f32 %v703, %v802
          %v901 = vadd.f32 %v704, %v848
          %v902 = vadd.f32 %v705, %v894
          %903 = vst.msk [vmem:[#allocation4] sm:$0xff] %vm400, %v899
          %904 = vst.msk [vmem:[#allocation4 + $0x8] sm:$0xff] %vm400, %v900
          %905 = vst.msk [vmem:[#allocation4 + $0x10] sm:$0xff] %vm400, %v901
          %906 = vst.msk [vmem:[#allocation4 + $0x18] sm:$0xff] %vm400, %v902
          %907 = vst.msk [vmem:[#allocation2] sm:$0xff] %vm673, %v601
          %908 = vst.msk [vmem:[#allocation2 + $0x8] sm:$0xff] %vm673, %v602
          %909 = vst.msk [vmem:[#allocation2 + $0x10] sm:$0xff] %vm673, %v603
          %910 = vst.msk [vmem:[#allocation2 + $0x18] sm:$0xff] %vm673, %v604
        $region64: #{tpu_custom_call.1} parent=39 // pred_fallthru
          _
        %p911 = scmp.le.s32.totalorder %s368, %s367
        %p912 = scmp.gt.s32.totalorder %s369, %s366
        %p913 = pnand %p911, %p912
        %p914 = pneg %p913
        // Predicated region
        $region65: #{tpu_custom_call.1} parent=39 // pred_check
          _
        $region66: #{tpu_custom_call.1} parent=39 // pred_check_branch
          %916 = sbr.rel (%p913) target = $region68
        $region67: #{tpu_custom_call.1} parent=39 // pred_region
          %v917 = vld [vmem:[%s306] sm:$0xf]
          %v918 = vld [vmem:[%s306 + $0x4] sm:$0xf]
          %v919 = vld [vmem:[%s306 + $0x8] sm:$0xf]
          %v920 = vld [vmem:[%s306 + $0xc] sm:$0xf]
          %v921 = vld [vmem:[%s315] sm:$0xf]
          %v922 = vld [vmem:[%s315 + $0x4] sm:$0xf]
          %v923 = vld [vmem:[%s315 + $0x8] sm:$0xf]
          %v924 = vld [vmem:[%s315 + $0xc] sm:$0xf]
          %vm925 = vcmask 64512
          %v927 = vsel %vm925, %v917, 0
          %v930 = vsel %vm925, %v921, 0
          %932 = vmatprep.subr.bf16.mxu0 0
          %933 = vmatpush1.bf16.xpose.msra.mxu0 0
          %934 = vmatprep.subr.bf16.mxu0 0
          %935 = vmatpush1.bf16.xpose.msra.mxu0 0
          %936 = vmatprep.subr.bf16.mxu0 0
          %937 = vmatpush1.bf16.xpose.msra.mxu0 0
          %938 = vmatprep.subr.bf16.mxu0 0
          %939 = vmatpush1.bf16.xpose.msra.mxu0 0
          %940 = vmatprep.subr.bf16.mxu0 0
          %941 = vmatpush1.bf16.xpose.msra.mxu0 0
          %942 = vmatprep.subr.bf16.mxu0 0
          %943 = vmatpush1.bf16.xpose.msra.mxu0 0
          %944 = vmatprep.subr.bf16.mxu0 0
          %945 = vmatpush1.bf16.xpose.msra.mxu0 0
          %946 = vmatprep.subr.bf16.mxu0 0
          %947 = vmatpush1.bf16.xpose.msra.mxu0 %v930
          %948 = vmatprep.subr.bf16.mxu0 0
          %949 = vmatpush2.bf16.xpose.msra.mxu0 0
          %950 = vmatprep.subr.bf16.mxu0 0
          %951 = vmatpush2.bf16.xpose.msra.mxu0 0
          %952 = vmatprep.subr.bf16.mxu0 0
          %953 = vmatpush2.bf16.xpose.msra.mxu0 0
          %954 = vmatprep.subr.bf16.mxu0 0
          %955 = vmatpush2.bf16.xpose.msra.mxu0 0
          %956 = vmatprep.subr.bf16.mxu0 0
          %957 = vmatpush2.bf16.xpose.msra.mxu0 0
          %958 = vmatprep.subr.bf16.mxu0 0
          %959 = vmatpush2.bf16.xpose.msra.mxu0 0
          %960 = vmatprep.subr.bf16.mxu0 0
          %961 = vmatpush2.bf16.xpose.msra.mxu0 0
          %962 = vmatprep.subr.bf16.mxu0 0
          %963 = vmatpush2.bf16.xpose.msra.mxu0 0
          %964 = vmatprep.mubr.bf16.mxu0 0
          %965 = vmatmul.mubr.bf16.gmra.mxu0 %v927
          %v966 = vpop.f32.mrf.mxu0
          %v967 = vadd.f32 0.0, %v966
          %v968 = vpop.f32.mrf.mxu0
          %v969 = vpop.f32.mrf.mxu0
          %v970 = vpop.f32.mrf.mxu0
          %971 = vdwg.mxu0
          %v973 = vsel %vm925, %v918, 0
          %v976 = vsel %vm925, %v922, 0
          %978 = vmatprep.subr.bf16.mxu0 0
          %979 = vmatpush1.bf16.xpose.msra.mxu0 0
          %980 = vmatprep.subr.bf16.mxu0 0
          %981 = vmatpush1.bf16.xpose.msra.mxu0 0
          %982 = vmatprep.subr.bf16.mxu0 0
          %983 = vmatpush1.bf16.xpose.msra.mxu0 0
          %984 = vmatprep.subr.bf16.mxu0 0
          %985 = vmatpush1.bf16.xpose.msra.mxu0 0
          %986 = vmatprep.subr.bf16.mxu0 0
          %987 = vmatpush1.bf16.xpose.msra.mxu0 0
          %988 = vmatprep.subr.bf16.mxu0 0
          %989 = vmatpush1.bf16.xpose.msra.mxu0 0
          %990 = vmatprep.subr.bf16.mxu0 0
          %991 = vmatpush1.bf16.xpose.msra.mxu0 0
          %992 = vmatprep.subr.bf16.mxu0 0
          %993 = vmatpush1.bf16.xpose.msra.mxu0 %v976
          %994 = vmatprep.subr.bf16.mxu0 0
          %995 = vmatpush2.bf16.xpose.msra.mxu0 0
          %996 = vmatprep.subr.bf16.mxu0 0
          %997 = vmatpush2.bf16.xpose.msra.mxu0 0
          %998 = vmatprep.subr.bf16.mxu0 0
          %999 = vmatpush2.bf16.xpose.msra.mxu0 0
          %1000 = vmatprep.subr.bf16.mxu0 0
          %1001 = vmatpush2.bf16.xpose.msra.mxu0 0
          %1002 = vmatprep.subr.bf16.mxu0 0
          %1003 = vmatpush2.bf16.xpose.msra.mxu0 0
          %1004 = vmatprep.subr.bf16.mxu0 0
          %1005 = vmatpush2.bf16.xpose.msra.mxu0 0
          %1006 = vmatprep.subr.bf16.mxu0 0
          %1007 = vmatpush2.bf16.xpose.msra.mxu0 0
          %1008 = vmatprep.subr.bf16.mxu0 0
          %1009 = vmatpush2.bf16.xpose.msra.mxu0 0
          %1010 = vmatprep.mubr.bf16.mxu0 0
          %1011 = vmatmul.mubr.bf16.gmra.mxu0 %v973
          %v1012 = vpop.f32.mrf.mxu0
          %v1013 = vadd.f32 0.0, %v1012
          %v1014 = vpop.f32.mrf.mxu0
          %v1015 = vpop.f32.mrf.mxu0
          %v1016 = vpop.f32.mrf.mxu0
          %1017 = vdwg.mxu0
          %v1019 = vsel %vm925, %v919, 0
          %v1022 = vsel %vm925, %v923, 0
          %1024 = vmatprep.subr.bf16.mxu0 0
          %1025 = vmatpush1.bf16.xpose.msra.mxu0 0
          %1026 = vmatprep.subr.bf16.mxu0 0
          %1027 = vmatpush1.bf16.xpose.msra.mxu0 0
          %1028 = vmatprep.subr.bf16.mxu0 0
          %1029 = vmatpush1.bf16.xpose.msra.mxu0 0
          %1030 = vmatprep.subr.bf16.mxu0 0
          %1031 = vmatpush1.bf16.xpose.msra.mxu0 0
          %1032 = vmatprep.subr.bf16.mxu0 0
          %1033 = vmatpush1.bf16.xpose.msra.mxu0 0
          %1034 = vmatprep.subr.bf16.mxu0 0
          %1035 = vmatpush1.bf16.xpose.msra.mxu0 0
          %1036 = vmatprep.subr.bf16.mxu0 0
          %1037 = vmatpush1.bf16.xpose.msra.mxu0 0
          %1038 = vmatprep.subr.bf16.mxu0 0
          %1039 = vmatpush1.bf16.xpose.msra.mxu0 %v1022
          %1040 = vmatprep.subr.bf16.mxu0 0
          %1041 = vmatpush2.bf16.xpose.msra.mxu0 0
          %1042 = vmatprep.subr.bf16.mxu0 0
          %1043 = vmatpush2.bf16.xpose.msra.mxu0 0
          %1044 = vmatprep.subr.bf16.mxu0 0
          %1045 = vmatpush2.bf16.xpose.msra.mxu0 0
          %1046 = vmatprep.subr.bf16.mxu0 0
          %1047 = vmatpush2.bf16.xpose.msra.mxu0 0
          %1048 = vmatprep.subr.bf16.mxu0 0
          %1049 = vmatpush2.bf16.xpose.msra.mxu0 0
          %1050 = vmatprep.subr.bf16.mxu0 0
          %1051 = vmatpush2.bf16.xpose.msra.mxu0 0
          %1052 = vmatprep.subr.bf16.mxu0 0
          %1053 = vmatpush2.bf16.xpose.msra.mxu0 0
          %1054 = vmatprep.subr.bf16.mxu0 0
          %1055 = vmatpush2.bf16.xpose.msra.mxu0 0
          %1056 = vmatprep.mubr.bf16.mxu0 0
          %1057 = vmatmul.mubr.bf16.gmra.mxu0 %v1019
          %v1058 = vpop.f32.mrf.mxu0
          %v1059 = vadd.f32 0.0, %v1058
          %v1060 = vpop.f32.mrf.mxu0
          %v1061 = vpop.f32.mrf.mxu0
          %v1062 = vpop.f32.mrf.mxu0
          %1063 = vdwg.mxu0
          %v1065 = vsel %vm925, %v920, 0
          %v1068 = vsel %vm925, %v924, 0
          %1070 = vmatprep.subr.bf16.mxu0 0
          %1071 = vmatpush1.bf16.xpose.msra.mxu0 0
          %1072 = vmatprep.subr.bf16.mxu0 0
          %1073 = vmatpush1.bf16.xpose.msra.mxu0 0
          %1074 = vmatprep.subr.bf16.mxu0 0
          %1075 = vmatpush1.bf16.xpose.msra.mxu0 0
          %1076 = vmatprep.subr.bf16.mxu0 0
          %1077 = vmatpush1.bf16.xpose.msra.mxu0 0
          %1078 = vmatprep.subr.bf16.mxu0 0
          %1079 = vmatpush1.bf16.xpose.msra.mxu0 0
          %1080 = vmatprep.subr.bf16.mxu0 0
          %1081 = vmatpush1.bf16.xpose.msra.mxu0 0
          %1082 = vmatprep.subr.bf16.mxu0 0
          %1083 = vmatpush1.bf16.xpose.msra.mxu0 0
          %1084 = vmatprep.subr.bf16.mxu0 0
          %1085 = vmatpush1.bf16.xpose.msra.mxu0 %v1068
          %1086 = vmatprep.subr.bf16.mxu0 0
          %1087 = vmatpush2.bf16.xpose.msra.mxu0 0
          %1088 = vmatprep.subr.bf16.mxu0 0
          %1089 = vmatpush2.bf16.xpose.msra.mxu0 0
          %1090 = vmatprep.subr.bf16.mxu0 0
          %1091 = vmatpush2.bf16.xpose.msra.mxu0 0
          %1092 = vmatprep.subr.bf16.mxu0 0
          %1093 = vmatpush2.bf16.xpose.msra.mxu0 0
          %1094 = vmatprep.subr.bf16.mxu0 0
          %1095 = vmatpush2.bf16.xpose.msra.mxu0 0
          %1096 = vmatprep.subr.bf16.mxu0 0
          %1097 = vmatpush2.bf16.xpose.msra.mxu0 0
          %1098 = vmatprep.subr.bf16.mxu0 0
          %1099 = vmatpush2.bf16.xpose.msra.mxu0 0
          %1100 = vmatprep.subr.bf16.mxu0 0
          %1101 = vmatpush2.bf16.xpose.msra.mxu0 0
          %1102 = vmatprep.mubr.bf16.mxu0 0
          %1103 = vmatmul.mubr.bf16.gmra.mxu0 %v1065
          %v1104 = vpop.f32.mrf.mxu0
          %v1105 = vadd.f32 0.0, %v1104
          %v1106 = vpop.f32.mrf.mxu0
          %v1107 = vpop.f32.mrf.mxu0
          %v1108 = vpop.f32.mrf.mxu0
          %1109 = vdwg.mxu0
          %v1110 = vlaneseq
          %v1111 = vshrl.u32 %v1110, 7
          %v1112 = vstv %s366
          %v1113 = vadd.s32 %v1112, %v1111
          %v1114 = vlaneseq
          %v1115 = vand.u32 %v1114, 127
          %v1116 = vstv %s368
          %v1117 = vadd.s32 %v1116, %v1115
          %vm1118 = vcmp.le.s32.totalorder %v1117, %v1113
          %v1119 = vsel %vm1118, 1, 0
          %vm1120 = vcmp.eq.s32.totalorder %v1119, 1
          %v1121 = vsel %vm1120, %v967, -1e+30
          %v1122 = vsel %vm1120, %v1013, -1e+30
          %v1123 = vsel %vm1120, %v1059, -1e+30
          %v1124 = vsel %vm1120, %v1105, -1e+30
          %v1125 = vld [vmem:[#allocation2] sm:$0xff]
          %v1126 = vld [vmem:[#allocation2 + $0x8] sm:$0xff]
          %v1127 = vld [vmem:[#allocation2 + $0x10] sm:$0xff]
          %v1128 = vld [vmem:[#allocation2 + $0x18] sm:$0xff]
          %v1129 = vsel %vm925, %v1121, -inf
          %1130 = vmax.xlane.f32.xlu0 %v1129
          %v1131 = vpop.xlane.xlu0 %1130
          %v1132 = vsel %vm925, %v1122, -inf
          %1133 = vmax.xlane.f32.xlu0 %v1132
          %v1134 = vpop.xlane.xlu0 %1133
          %v1135 = vsel %vm925, %v1123, -inf
          %1136 = vmax.xlane.f32.xlu0 %v1135
          %v1137 = vpop.xlane.xlu0 %1136
          %v1138 = vsel %vm925, %v1124, -inf
          %1139 = vmax.xlane.f32.xlu0 %v1138
          %v1140 = vpop.xlane.xlu0 %1139
          %v1141 = vmax.f32 %v1125, %v1131
          %v1142 = vmax.f32 %v1126, %v1134
          %v1143 = vmax.f32 %v1127, %v1137
          %v1144 = vmax.f32 %v1128, %v1140
          %v1145 = vsub.f32 %v1125, %v1141
          %v1146 = vsub.f32 %v1126, %v1142
          %v1147 = vsub.f32 %v1127, %v1143
          %v1148 = vsub.f32 %v1128, %v1144
          %v1149 = vmul.f32 %v1145, 1.442695
          %v1150 = vpow.pop %v1149
          %v1151 = vmul.f32 %v1146, 1.442695
          %v1152 = vpow.pop %v1151
          %v1153 = vmul.f32 %v1147, 1.442695
          %v1154 = vpow.pop %v1153
          %v1155 = vmul.f32 %v1148, 1.442695
          %v1156 = vpow.pop %v1155
          %1158 = vset.pattern.permute.xlu0 0
          %1159 = vperm.xlu0 %1158, %v1141
          %v1160 = vpop.permute.xlu0 %1159
          %1163 = vset.pattern.permute.xlu0 0
          %1164 = vperm.xlu0 %1163, %v1142
          %v1165 = vpop.permute.xlu0 %1164
          %1168 = vset.pattern.permute.xlu0 0
          %1169 = vperm.xlu0 %1168, %v1143
          %v1170 = vpop.permute.xlu0 %1169
          %1173 = vset.pattern.permute.xlu0 0
          %1174 = vperm.xlu0 %1173, %v1144
          %v1175 = vpop.permute.xlu0 %1174
          %v1177 = vsub.f32 %v1121, %v1160
          %v1178 = vsub.f32 %v1122, %v1165
          %v1179 = vsub.f32 %v1123, %v1170
          %v1180 = vsub.f32 %v1124, %v1175
          %v1181 = vmul.f32 %v1177, 1.442695
          %v1182 = vpow.pop %v1181
          %v1183 = vmul.f32 %v1178, 1.442695
          %v1184 = vpow.pop %v1183
          %v1185 = vmul.f32 %v1179, 1.442695
          %v1186 = vpow.pop %v1185
          %v1187 = vmul.f32 %v1180, 1.442695
          %v1188 = vpow.pop %v1187
          %v1189 = vld [vmem:[#allocation3] sm:$0xff]
          %v1190 = vld [vmem:[#allocation3 + $0x8] sm:$0xff]
          %v1191 = vld [vmem:[#allocation3 + $0x10] sm:$0xff]
          %v1192 = vld [vmem:[#allocation3 + $0x18] sm:$0xff]
          %v1193 = vmul.f32 %v1150, %v1189
          %v1194 = vmul.f32 %v1152, %v1190
          %v1195 = vmul.f32 %v1154, %v1191
          %v1196 = vmul.f32 %v1156, %v1192
          %v1197 = vsel %vm925, %v1182, 0.0
          %1198 = vadd.xlane.f32.xlu0 %v1197
          %v1199 = vpop.xlane.xlu0 %1198
          %v1200 = vsel %vm925, %v1184, 0.0
          %1201 = vadd.xlane.f32.xlu0 %v1200
          %v1202 = vpop.xlane.xlu0 %1201
          %v1203 = vsel %vm925, %v1186, 0.0
          %1204 = vadd.xlane.f32.xlu0 %v1203
          %v1205 = vpop.xlane.xlu0 %1204
          %v1206 = vsel %vm925, %v1188, 0.0
          %1207 = vadd.xlane.f32.xlu0 %v1206
          %v1208 = vpop.xlane.xlu0 %1207
          %v1209 = vadd.f32 %v1193, %v1199
          %v1210 = vadd.f32 %v1194, %v1202
          %v1211 = vadd.f32 %v1195, %v1205
          %v1212 = vadd.f32 %v1196, %v1208
          %vm1213 = vcmask 7168
          %1214 = vst.msk [vmem:[#allocation3] sm:$0xff] %vm1213, %v1209
          %1215 = vst.msk [vmem:[#allocation3 + $0x8] sm:$0xff] %vm1213, %v1210
          %1216 = vst.msk [vmem:[#allocation3 + $0x10] sm:$0xff] %vm1213, %v1211
          %1217 = vst.msk [vmem:[#allocation3 + $0x18] sm:$0xff] %vm1213, %v1212
          %v1218 = vld [vmem:[#allocation4] sm:$0xff]
          %v1219 = vld [vmem:[#allocation4 + $0x8] sm:$0xff]
          %v1220 = vld [vmem:[#allocation4 + $0x10] sm:$0xff]
          %v1221 = vld [vmem:[#allocation4 + $0x18] sm:$0xff]
          %1223 = vset.pattern.permute.xlu0 0
          %1224 = vperm.xlu0 %1223, %v1150
          %v1225 = vpop.permute.xlu0 %1224
          %1228 = vset.pattern.permute.xlu0 0
          %1229 = vperm.xlu0 %1228, %v1152
          %v1230 = vpop.permute.xlu0 %1229
          %1233 = vset.pattern.permute.xlu0 0
          %1234 = vperm.xlu0 %1233, %v1154
          %v1235 = vpop.permute.xlu0 %1234
          %1238 = vset.pattern.permute.xlu0 0
          %1239 = vperm.xlu0 %1238, %v1156
          %v1240 = vpop.permute.xlu0 %1239
          %v1242 = vmul.f32 %v1225, %v1218
          %v1243 = vmul.f32 %v1230, %v1219
          %v1244 = vmul.f32 %v1235, %v1220
          %v1245 = vmul.f32 %v1240, %v1221
          %v1246 = vpack.c.bf16 %v1182, %v1182
          %v1247 = vpack.c.bf16 %v1184, %v1184
          %v1248 = vpack.c.bf16 %v1186, %v1186
          %v1249 = vpack.c.bf16 %v1188, %v1188
          %v1250 = vld [vmem:[%s324] sm:$0xf]
          %v1251 = vld [vmem:[%s324 + $0x4] sm:$0xf]
          %v1252 = vld [vmem:[%s324 + $0x8] sm:$0xf]
          %v1253 = vld [vmem:[%s324 + $0xc] sm:$0xf]
          %v1255 = vsel %vm925, %v1246, 0
          %vm1257 = vcmask 1043456
          %v1259 = vsel %vm1257, %v1250, 0
          %1261 = vmatprep.subr.bf16.mxu0 0
          %1262 = vmatpush1.bf16.msra.mxu0 0
          %1263 = vmatprep.subr.bf16.mxu0 0
          %1264 = vmatpush1.bf16.msra.mxu0 0
          %1265 = vmatprep.subr.bf16.mxu0 0
          %1266 = vmatpush1.bf16.msra.mxu0 0
          %1267 = vmatprep.subr.bf16.mxu0 0
          %1268 = vmatpush1.bf16.msra.mxu0 0
          %1269 = vmatprep.subr.bf16.mxu0 0
          %1270 = vmatpush1.bf16.msra.mxu0 0
          %1271 = vmatprep.subr.bf16.mxu0 0
          %1272 = vmatpush1.bf16.msra.mxu0 0
          %1273 = vmatprep.subr.bf16.mxu0 0
          %1274 = vmatpush1.bf16.msra.mxu0 0
          %1275 = vmatprep.subr.bf16.mxu0 0
          %1276 = vmatpush1.bf16.msra.mxu0 %v1259
          %1277 = vmatprep.subr.bf16.mxu0 0
          %1278 = vmatpush2.bf16.msra.mxu0 0
          %1279 = vmatprep.subr.bf16.mxu0 0
          %1280 = vmatpush2.bf16.msra.mxu0 0
          %1281 = vmatprep.subr.bf16.mxu0 0
          %1282 = vmatpush2.bf16.msra.mxu0 0
          %1283 = vmatprep.subr.bf16.mxu0 0
          %1284 = vmatpush2.bf16.msra.mxu0 0
          %1285 = vmatprep.subr.bf16.mxu0 0
          %1286 = vmatpush2.bf16.msra.mxu0 0
          %1287 = vmatprep.subr.bf16.mxu0 0
          %1288 = vmatpush2.bf16.msra.mxu0 0
          %1289 = vmatprep.subr.bf16.mxu0 0
          %1290 = vmatpush2.bf16.msra.mxu0 0
          %1291 = vmatprep.subr.bf16.mxu0 0
          %1292 = vmatpush2.bf16.msra.mxu0 0
          %1293 = vmatprep.mubr.bf16.mxu0 0
          %1294 = vmatmul.mubr.bf16.gmra.mxu0 %v1255
          %v1295 = vpop.f32.mrf.mxu0
          %v1296 = vadd.f32 0.0, %v1295
          %v1297 = vpop.f32.mrf.mxu0
          %v1298 = vpop.f32.mrf.mxu0
          %v1299 = vpop.f32.mrf.mxu0
          %1300 = vdwg.mxu0
          %v1302 = vsel %vm925, %v1247, 0
          %v1305 = vsel %vm1257, %v1251, 0
          %1307 = vmatprep.subr.bf16.mxu0 0
          %1308 = vmatpush1.bf16.msra.mxu0 0
          %1309 = vmatprep.subr.bf16.mxu0 0
          %1310 = vmatpush1.bf16.msra.mxu0 0
          %1311 = vmatprep.subr.bf16.mxu0 0
          %1312 = vmatpush1.bf16.msra.mxu0 0
          %1313 = vmatprep.subr.bf16.mxu0 0
          %1314 = vmatpush1.bf16.msra.mxu0 0
          %1315 = vmatprep.subr.bf16.mxu0 0
          %1316 = vmatpush1.bf16.msra.mxu0 0
          %1317 = vmatprep.subr.bf16.mxu0 0
          %1318 = vmatpush1.bf16.msra.mxu0 0
          %1319 = vmatprep.subr.bf16.mxu0 0
          %1320 = vmatpush1.bf16.msra.mxu0 0
          %1321 = vmatprep.subr.bf16.mxu0 0
          %1322 = vmatpush1.bf16.msra.mxu0 %v1305
          %1323 = vmatprep.subr.bf16.mxu0 0
          %1324 = vmatpush2.bf16.msra.mxu0 0
          %1325 = vmatprep.subr.bf16.mxu0 0
          %1326 = vmatpush2.bf16.msra.mxu0 0
          %1327 = vmatprep.subr.bf16.mxu0 0
          %1328 = vmatpush2.bf16.msra.mxu0 0
          %1329 = vmatprep.subr.bf16.mxu0 0
          %1330 = vmatpush2.bf16.msra.mxu0 0
          %1331 = vmatprep.subr.bf16.mxu0 0
          %1332 = vmatpush2.bf16.msra.mxu0 0
          %1333 = vmatprep.subr.bf16.mxu0 0
          %1334 = vmatpush2.bf16.msra.mxu0 0
          %1335 = vmatprep.subr.bf16.mxu0 0
          %1336 = vmatpush2.bf16.msra.mxu0 0
          %1337 = vmatprep.subr.bf16.mxu0 0
          %1338 = vmatpush2.bf16.msra.mxu0 0
          %1339 = vmatprep.mubr.bf16.mxu0 0
          %1340 = vmatmul.mubr.bf16.gmra.mxu0 %v1302
          %v1341 = vpop.f32.mrf.mxu0
          %v1342 = vadd.f32 0.0, %v1341
          %v1343 = vpop.f32.mrf.mxu0
          %v1344 = vpop.f32.mrf.mxu0
          %v1345 = vpop.f32.mrf.mxu0
          %1346 = vdwg.mxu0
          %v1348 = vsel %vm925, %v1248, 0
          %v1351 = vsel %vm1257, %v1252, 0
          %1353 = vmatprep.subr.bf16.mxu0 0
          %1354 = vmatpush1.bf16.msra.mxu0 0
          %1355 = vmatprep.subr.bf16.mxu0 0
          %1356 = vmatpush1.bf16.msra.mxu0 0
          %1357 = vmatprep.subr.bf16.mxu0 0
          %1358 = vmatpush1.bf16.msra.mxu0 0
          %1359 = vmatprep.subr.bf16.mxu0 0
          %1360 = vmatpush1.bf16.msra.mxu0 0
          %1361 = vmatprep.subr.bf16.mxu0 0
          %1362 = vmatpush1.bf16.msra.mxu0 0
          %1363 = vmatprep.subr.bf16.mxu0 0
          %1364 = vmatpush1.bf16.msra.mxu0 0
          %1365 = vmatprep.subr.bf16.mxu0 0
          %1366 = vmatpush1.bf16.msra.mxu0 0
          %1367 = vmatprep.subr.bf16.mxu0 0
          %1368 = vmatpush1.bf16.msra.mxu0 %v1351
          %1369 = vmatprep.subr.bf16.mxu0 0
          %1370 = vmatpush2.bf16.msra.mxu0 0
          %1371 = vmatprep.subr.bf16.mxu0 0
          %1372 = vmatpush2.bf16.msra.mxu0 0
          %1373 = vmatprep.subr.bf16.mxu0 0
          %1374 = vmatpush2.bf16.msra.mxu0 0
          %1375 = vmatprep.subr.bf16.mxu0 0
          %1376 = vmatpush2.bf16.msra.mxu0 0
          %1377 = vmatprep.subr.bf16.mxu0 0
          %1378 = vmatpush2.bf16.msra.mxu0 0
          %1379 = vmatprep.subr.bf16.mxu0 0
          %1380 = vmatpush2.bf16.msra.mxu0 0
          %1381 = vmatprep.subr.bf16.mxu0 0
          %1382 = vmatpush2.bf16.msra.mxu0 0
          %1383 = vmatprep.subr.bf16.mxu0 0
          %1384 = vmatpush2.bf16.msra.mxu0 0
          %1385 = vmatprep.mubr.bf16.mxu0 0
          %1386 = vmatmul.mubr.bf16.gmra.mxu0 %v1348
          %v1387 = vpop.f32.mrf.mxu0
          %v1388 = vadd.f32 0.0, %v1387
          %v1389 = vpop.f32.mrf.mxu0
          %v1390 = vpop.f32.mrf.mxu0
          %v1391 = vpop.f32.mrf.mxu0
          %1392 = vdwg.mxu0
          %v1394 = vsel %vm925, %v1249, 0
          %v1397 = vsel %vm1257, %v1253, 0
          %1399 = vmatprep.subr.bf16.mxu0 0
          %1400 = vmatpush1.bf16.msra.mxu0 0
          %1401 = vmatprep.subr.bf16.mxu0 0
          %1402 = vmatpush1.bf16.msra.mxu0 0
          %1403 = vmatprep.subr.bf16.mxu0 0
          %1404 = vmatpush1.bf16.msra.mxu0 0
          %1405 = vmatprep.subr.bf16.mxu0 0
          %1406 = vmatpush1.bf16.msra.mxu0 0
          %1407 = vmatprep.subr.bf16.mxu0 0
          %1408 = vmatpush1.bf16.msra.mxu0 0
          %1409 = vmatprep.subr.bf16.mxu0 0
          %1410 = vmatpush1.bf16.msra.mxu0 0
          %1411 = vmatprep.subr.bf16.mxu0 0
          %1412 = vmatpush1.bf16.msra.mxu0 0
          %1413 = vmatprep.subr.bf16.mxu0 0
          %1414 = vmatpush1.bf16.msra.mxu0 %v1397
          %1415 = vmatprep.subr.bf16.mxu0 0
          %1416 = vmatpush2.bf16.msra.mxu0 0
          %1417 = vmatprep.subr.bf16.mxu0 0
          %1418 = vmatpush2.bf16.msra.mxu0 0
          %1419 = vmatprep.subr.bf16.mxu0 0
          %1420 = vmatpush2.bf16.msra.mxu0 0
          %1421 = vmatprep.subr.bf16.mxu0 0
          %1422 = vmatpush2.bf16.msra.mxu0 0
          %1423 = vmatprep.subr.bf16.mxu0 0
          %1424 = vmatpush2.bf16.msra.mxu0 0
          %1425 = vmatprep.subr.bf16.mxu0 0
          %1426 = vmatpush2.bf16.msra.mxu0 0
          %1427 = vmatprep.subr.bf16.mxu0 0
          %1428 = vmatpush2.bf16.msra.mxu0 0
          %1429 = vmatprep.subr.bf16.mxu0 0
          %1430 = vmatpush2.bf16.msra.mxu0 0
          %1431 = vmatprep.mubr.bf16.mxu0 0
          %1432 = vmatmul.mubr.bf16.gmra.mxu0 %v1394
          %v1433 = vpop.f32.mrf.mxu0
          %v1434 = vadd.f32 0.0, %v1433
          %v1435 = vpop.f32.mrf.mxu0
          %v1436 = vpop.f32.mrf.mxu0
          %v1437 = vpop.f32.mrf.mxu0
          %1438 = vdwg.mxu0
          %v1439 = vadd.f32 %v1242, %v1296
          %v1440 = vadd.f32 %v1243, %v1342
          %v1441 = vadd.f32 %v1244, %v1388
          %v1442 = vadd.f32 %v1245, %v1434
          %1443 = vst.msk [vmem:[#allocation4] sm:$0xff] %vm925, %v1439
          %1444 = vst.msk [vmem:[#allocation4 + $0x8] sm:$0xff] %vm925, %v1440
          %1445 = vst.msk [vmem:[#allocation4 + $0x10] sm:$0xff] %vm925, %v1441
          %1446 = vst.msk [vmem:[#allocation4 + $0x18] sm:$0xff] %vm925, %v1442
          %1447 = vst.msk [vmem:[#allocation2] sm:$0xff] %vm1213, %v1141
          %1448 = vst.msk [vmem:[#allocation2 + $0x8] sm:$0xff] %vm1213, %v1142
          %1449 = vst.msk [vmem:[#allocation2 + $0x10] sm:$0xff] %vm1213, %v1143
          %1450 = vst.msk [vmem:[#allocation2 + $0x18] sm:$0xff] %vm1213, %v1144
        $region68: #{tpu_custom_call.1} parent=39 // pred_fallthru
          _
        // Predicated region
        $region69: #{tpu_custom_call.1} parent=39 // pred_check
          %p1451 = pneg %p370
        $region70: #{tpu_custom_call.1} parent=39 // pred_check_branch
          %1453 = sbr.rel (%p1451) target = $region72
        $region71: #{tpu_custom_call.1} parent=39 // pred_region
          %v1454 = vld [vmem:[#allocation3] sm:$0xff]
          %v1455 = vld [vmem:[#allocation3 + $0x8] sm:$0xff]
          %v1456 = vld [vmem:[#allocation3 + $0x10] sm:$0xff]
          %v1457 = vld [vmem:[#allocation3 + $0x18] sm:$0xff]
          %v1458 = vrcp.pop %v1454
          %v1459 = vrcp.pop %v1455
          %v1460 = vrcp.pop %v1456
          %v1461 = vrcp.pop %v1457
          %v1462 = vld [vmem:[#allocation4] sm:$0xff]
          %v1463 = vld [vmem:[#allocation4 + $0x8] sm:$0xff]
          %v1464 = vld [vmem:[#allocation4 + $0x10] sm:$0xff]
          %v1465 = vld [vmem:[#allocation4 + $0x18] sm:$0xff]
          %1467 = vset.pattern.permute.xlu0 0
          %1468 = vperm.xlu0 %1467, %v1458
          %v1469 = vpop.permute.xlu0 %1468
          %1472 = vset.pattern.permute.xlu0 0
          %1473 = vperm.xlu0 %1472, %v1459
          %v1474 = vpop.permute.xlu0 %1473
          %1477 = vset.pattern.permute.xlu0 0
          %1478 = vperm.xlu0 %1477, %v1460
          %v1479 = vpop.permute.xlu0 %1478
          %1482 = vset.pattern.permute.xlu0 0
          %1483 = vperm.xlu0 %1482, %v1461
          %v1484 = vpop.permute.xlu0 %1483
          %v1486 = vmul.f32 %v1462, %v1469
          %v1487 = vmul.f32 %v1463, %v1474
          %v1488 = vmul.f32 %v1464, %v1479
          %v1489 = vmul.f32 %v1465, %v1484
          %1491 = vrot.lane.b32.xlu0 %v1487, 8
          %v1492 = vpop.permute.xlu0 %1491
          %1495 = vrot.lane.b32.xlu0 %v1488, 16
          %v1496 = vpop.permute.xlu0 %1495
          %1499 = vrot.lane.b32.xlu0 %v1489, 24
          %v1500 = vpop.permute.xlu0 %1499
          %vm1502 = vcmask 64512
          %v1503 = vsel %vm1502, %v1486, %v1492
          %vm1504 = vcmask 130048
          %v1505 = vsel %vm1504, %v1503, %v1496
          %vm1506 = vcmask 195584
          %v1507 = vsel %vm1506, %v1505, %v1500
          %v1508 = vpack.c.bf16 %v1507, %v1507
          %v1509 = vld [vmem:[#allocation11] sm:$0xf]
          %v1510 = vld [vmem:[#allocation11 + $0x4] sm:$0xf]
          %v1511 = vld [vmem:[#allocation11 + $0x8] sm:$0xf]
          %v1512 = vld [vmem:[#allocation11 + $0xc] sm:$0xf]
          %v1513 = vld [vmem:[%s4] sm:$0x1]
          %v1515 = vlaneseq
          %v1516 = vshrl.u32 %v1515, 7
          %v1517 = vsub.s32 0, %v1516
          %v1518 = vrot.slane %v1513, %v1517
          %v1524 = vunpack.c.l.b16 %v1509
          %v1525 = vunpack.c.l.b16 %v1510
          %v1526 = vunpack.c.l.b16 %v1511
          %v1527 = vunpack.c.l.b16 %v1512
          %v1528 = vpack.c.b16 %v1525, %v1524
          %v1529 = vpack.c.b16 %v1527, %v1526
          %vm1532 = vcmask 261120
          %v1534 = vsel %vm1532, %v1508, 0
          %1536 = vmatprep.subr.bf16.mxu0 0
          %1537 = vmatpush1.bf16.msra.mxu0 0
          %1538 = vmatprep.subr.bf16.mxu0 0
          %1539 = vmatpush1.bf16.msra.mxu0 0
          %1540 = vmatprep.subr.bf16.mxu0 0
          %1541 = vmatpush1.bf16.msra.mxu0 0
          %1542 = vmatprep.subr.bf16.mxu0 0
          %1543 = vmatpush1.bf16.msra.mxu0 0
          %1544 = vmatprep.subr.bf16.mxu0 0
          %1545 = vmatpush1.bf16.msra.mxu0 0
          %1546 = vmatprep.subr.bf16.mxu0 0
          %1547 = vmatpush1.bf16.msra.mxu0 0
          %1548 = vmatprep.subr.bf16.mxu0 0
          %1549 = vmatpush1.bf16.msra.mxu0 %v1529
          %1550 = vmatprep.subr.bf16.mxu0 0
          %1551 = vmatpush1.bf16.msra.mxu0 %v1528
          %1552 = vmatprep.subr.bf16.mxu0 0
          %1553 = vmatpush2.bf16.msra.mxu0 0
          %1554 = vmatprep.subr.bf16.mxu0 0
          %1555 = vmatpush2.bf16.msra.mxu0 0
          %1556 = vmatprep.subr.bf16.mxu0 0
          %1557 = vmatpush2.bf16.msra.mxu0 0
          %1558 = vmatprep.subr.bf16.mxu0 0
          %1559 = vmatpush2.bf16.msra.mxu0 0
          %1560 = vmatprep.subr.bf16.mxu0 0
          %1561 = vmatpush2.bf16.msra.mxu0 0
          %1562 = vmatprep.subr.bf16.mxu0 0
          %1563 = vmatpush2.bf16.msra.mxu0 0
          %1564 = vmatprep.subr.bf16.mxu0 0
          %1565 = vmatpush2.bf16.msra.mxu0 0
          %1566 = vmatprep.subr.bf16.mxu0 0
          %1567 = vmatpush2.bf16.msra.mxu0 0
          %1568 = vmatprep.mubr.bf16.mxu0 0
          %1569 = vmatmul.mubr.bf16.gmra.mxu0 %v1534
          %v1570 = vpop.f32.mrf.mxu0
          %v1571 = vadd.f32 %v1518, %v1570
          %v1572 = vpop.f32.mrf.mxu0
          %v1573 = vpop.f32.mrf.mxu0
          %v1574 = vpop.f32.mrf.mxu0
          %1575 = vdwg.mxu0
          %1576 = vst.msk [vmem:[%s364] sm:$0xff] %vm1532, %v1571
        $region72: #{tpu_custom_call.1} parent=39 // pred_fallthru
          _
        %s1577 = sand.u32 %s181, 1
        %s1578 = scalar_lea.sflag [#allocation7], %s1577
        %s1579 = sand.u32 %s181, 1
        %s1580 = smul.addr %s1579, 8
        %s1581 = scalar_lea.vmem [#allocation13], %s1580
        // Predicated region
        $region73: #{tpu_custom_call.1} parent=39 // pred_check
          %p1582 = pneg %p191
        $region74: #{tpu_custom_call.1} parent=39 // pred_check_branch
          %1584 = sbr.rel (%p1582) target = $region76
        $region75: #{tpu_custom_call.1} parent=39 // pred_region
          %s1586 = ssub.s32 128, 128
          %1587 = vsyncadd %s1578, %s1586
          %s1588 = sadd.s32 %s32, %s31
          %s1589 = smul.addr %s1588, 128
          %s1590 = scalar_lea.hbm %s5, %s1589
          %s1592 = sshll.u32 %s1581, 4
          %s1593 = int_to_ptr.vmem [resolvable:$true] %s1592
          %1595 = dma.vmem_to_hbm [thread:$0]  %s1593, 128, %s1590, %s1578
        $region76: #{tpu_custom_call.1} parent=39 // pred_fallthru
          _
      $region40: #{tpu_custom_call.1} parent=5 // pred_fallthru
        _
      %p1596 = scmp.le.s32.totalorder 2, %s21
      // Predicated region
      $region77: #{tpu_custom_call.1} parent=5 // pred_check
        %p1597 = pneg %p1596
      $region78: #{tpu_custom_call.1} parent=5 // pred_check_branch
        %1599 = sbr.rel (%p1597) target = $region80
      $region79: #{tpu_custom_call.1} parent=5 // pred_region
        %s1600 = ssub.s32 %s21, 2
        // Predicated region
        $region81: #{tpu_custom_call.1} parent=79 // pred_check
          %p1601 = pneg %p197
        $region82: #{tpu_custom_call.1} parent=79 // pred_check_branch
          %1603 = sbr.rel (%p1601) target = $region84
        $region83: #{tpu_custom_call.1} parent=79 // pred_region
          %s1604 = sand.u32 %s182, 1
          %s1605 = scalar_lea.sflag [#allocation7], %s1604
          %s1606 = sand.u32 %s182, 1
          %s1607 = smul.addr %s1606, 8
          %s1608 = scalar_lea.vmem [#allocation13], %s1607
          %1609 = dma.done %s1605, 128
        $region84: #{tpu_custom_call.1} parent=79 // pred_fallthru
          _
      $region80: #{tpu_custom_call.1} parent=5 // pred_fallthru
        _
    $region6: #{tpu_custom_call.1} parent=1 // loop_footer
      %s25 = sadd.s32 1, %s21
    $region7: #{tpu_custom_call.1} parent=1 // loop_footer_branch
      %20 = sbr.rel target = $region3
    $region8: #{tpu_custom_call.1} parent=1 // loop_exit
      _
    %1610 = vsyncpa [#allocation6], 1
    %s1611 = scalar_lea.sflag [#allocation6], 1
    %1612 = vsyncpa %s1611, 1
    %1613 = vsyncpa [#allocation9], 1
    %s1614 = scalar_lea.sflag [#allocation9], 1
    %1615 = vsyncpa %s1614, 1
    %1616 = vsyncpa [#allocation12], 1
    %1617 = vsyncpa [#allocation7], 1
    %s1618 = scalar_lea.sflag [#allocation7], 1
    %1619 = vsyncpa %s1618, 1

</llo_original>
